<compile_context>
chip_gen: v5e
topology: v5e:2x2
jax: 0.10.0
libtpu: 0.0.40
codegen_flags: <defaults>
</compile_context>

<pallas_src>
import functools

import jax
import jax.numpy as jnp
import numpy as np
from jax.experimental import pallas as pl
from jax.experimental.pallas import tpu as pltpu


def _round_up(v, m):
    return (v + m - 1) // m * m


def _spectral_conv_kernel(x_ref, f_ref, cost_ref, nsint_ref, w_ref, out_ref, *,
                          bt, mp, coutp):
    # Batch-shared, VMEM-resident operators (constant index_map -> DMA'd once).
    fwd = f_ref[...]        # (2Mp, N)           [cos; sin]
    cost = cost_ref[...]    # (N, Mp)            cos^T
    nsint = nsint_ref[...]  # (N, Mp)            -sin^T
    wa = w_ref[...]         # (2Mp, Cinp, 2Coutp) complex-mix weights (1/N folded in)

    # Statically unrolled loop over the batch tile: per element three MXU
    # stages (forward transform, per-mode channel mix, inverse transform).
    for b in range(bt):
        xb = x_ref[b]                                                # (N, Cinp)

        # Fused forward Fourier transform: one MXU matmul -> [cos@x ; sin@x].
        xf = jnp.dot(fwd, xb, preferred_element_type=jnp.float32)    # (2Mp, Cinp)

        # Mode-batched complex channel mix on the MXU (batch dim = 2Mp stacked
        # modes, contraction over Cin). Output lanes: [out_r | out_i] pieces.
        zz = jnp.einsum("mri,mio->mro", xf[:, None, :], wa,
                        preferred_element_type=jnp.float32)          # (2Mp, 1, 2Coutp)
        zz = jnp.sum(zz, axis=1)                                      # (2Mp, 2Coutp)

        # Combine the cos- and sin-driven halves (sublane-aligned slices, no
        # relayout): z = [out_r | out_i]  of shape (Mp, 2Coutp).
        z = zz[:mp] + zz[mp:]

        # Inverse transform: y = cos^T @ out_r - sin^T @ out_i.
        zr = z[:, :coutp].astype(cost.dtype)                          # lane-slice views
        zi = z[:, coutp:].astype(cost.dtype)
        y = jnp.dot(cost, zr, preferred_element_type=jnp.float32)
        y = y + jnp.dot(nsint, zi, preferred_element_type=jnp.float32)  # (N, Coutp)

        out_ref[b] = y.astype(out_ref.dtype)


def spectral_conv1d_smm(x, cosM, sinM, w_real, w_imag, *,
                        mxu_dtype=jnp.float32, max_batch_tile=8):
    """SpectralConv1d_SMM forward.

    Args:
      x:      (B, N, Cin) real input.
      cosM:   (M, N) = cos(m * theta_t), batch-shared grid operator.
      sinM:   (M, N) = sin(m * theta_t).
      w_real: (Cin, Cout, M) real part of the complex weights.
      w_imag: (Cin, Cout, M) imaginary part.
      mxu_dtype: dtype used to feed the Fourier matmuls (bf16 on v6e/v7x for
        ~2x MXU throughput; f32 accumulation is kept either way).
      max_batch_tile: max batch elements processed per grid step.
    Returns:
      (B, N, Cout) float32 == Re(V_inv @ (W * (V_fwd @ x / N))).
    """
    # TODO(synk): per-batch (non-shared) grids (VFT point_positions) would need
    # (B, ...) V-operator blocks with index_map lambda b: (b, 0, 0); only the
    # batch-shared fast path (equispaced / common grid) is wired here.
    B, N, Cin = x.shape
    M = cosM.shape[0]
    Cout = w_real.shape[1]

    Mp = _round_up(M, 8)        # sublane-align the mode axis
    Cinp = _round_up(Cin, 128)  # lane-align channels
    Coutp = _round_up(Cout, 128)

    f32 = jnp.float32
    cosM = cosM.astype(f32)
    sinM = sinM.astype(f32)

    # Fused forward operator F = [cos; sin] (2Mp, N); padded modes are zero rows.
    fwd = jnp.zeros((2 * Mp, N), f32).at[:M].set(cosM).at[Mp:Mp + M].set(sinM)

    # Pre-transposed inverse operators (N, Mp): cos^T and -sin^T (no in-kernel
    # transpose, no sublane concat — the channel-mix halves feed them directly).
    cosT = jnp.zeros((N, Mp), f32).at[:, :M].set(cosM.T)
    nsinT = jnp.zeros((N, Mp), f32).at[:, :M].set(-sinM.T)

    # Mode-stacked complex-mix weights with the 1/N forward norm folded in:
    #   zz[m]    = (cos@x)[m] @ [wr/N | wi/N]
    #   zz[Mp+m] = (sin@x)[m] @ [wi/N | -wr/N]
    #   z[m]     = zz[m] + zz[Mp+m] = [out_r[m] | out_i[m]]
    wr = jnp.transpose(w_real.astype(f32), (2, 0, 1)) / N   # (M, Cin, Cout)
    wi = jnp.transpose(w_imag.astype(f32), (2, 0, 1)) / N
    wa = jnp.zeros((2 * Mp, Cinp, 2 * Coutp), f32)
    wa = wa.at[:M, :Cin, :Cout].set(wr)
    wa = wa.at[:M, :Cin, Coutp:Coutp + Cout].set(wi)
    wa = wa.at[Mp:Mp + M, :Cin, :Cout].set(wi)
    wa = wa.at[Mp:Mp + M, :Cin, Coutp:Coutp + Cout].set(-wr)

    # Batch tile: amortize per-grid-step overhead while keeping the pipelined
    # per-step input/output buffers under a ~4 MiB budget.
    in_bytes = jnp.dtype(mxu_dtype).itemsize
    per_b_bytes = N * Cinp * in_bytes + N * Coutp * 4
    bt = int(max(1, min(max_batch_tile, B, (4 << 20) // max(per_b_bytes, 1))))
    Bpad = _round_up(B, bt)

    # Zero-pad the batch to a tile multiple and channels to a lane multiple.
    x_p = jnp.zeros((Bpad, N, Cinp), f32).at[:B, :, :Cin].set(x.astype(f32))

    # Optional bf16 feed of the MXU (v6e/v7x); channel-mix weights and all
    # accumulation stay f32.
    fwd = fwd.astype(mxu_dtype)
    cosT = cosT.astype(mxu_dtype)
    nsinT = nsinT.astype(mxu_dtype)
    x_p = x_p.astype(mxu_dtype)

    kernel = functools.partial(_spectral_conv_kernel, bt=bt, mp=Mp, coutp=Coutp)

    out_p = pl.pallas_call(
        kernel,
        out_shape=jax.ShapeDtypeStruct((Bpad, N, Coutp), jnp.float32),
        grid_spec=pltpu.PrefetchScalarGridSpec(
            num_scalar_prefetch=0,
            grid=(Bpad // bt,),
            in_specs=[
                # Per-step batch-tile input block.
                pl.BlockSpec((bt, N, Cinp), lambda g: (g, 0, 0)),
                # Batch-shared operators: constant index_map -> fetched once and
                # resident in VMEM for the whole grid.
                pl.BlockSpec((2 * Mp, N), lambda g: (0, 0)),
                pl.BlockSpec((N, Mp), lambda g: (0, 0)),
                pl.BlockSpec((N, Mp), lambda g: (0, 0)),
                pl.BlockSpec((2 * Mp, Cinp, 2 * Coutp), lambda g: (0, 0, 0)),
            ],
            # Lane-dense (128-multiple) output block -> unmasked vector stores.
            out_specs=pl.BlockSpec((bt, N, Coutp), lambda g: (g, 0, 0)),
        ),
        compiler_params=pltpu.CompilerParams(
            dimension_semantics=("parallel",),
        ),
    )(x_p, fwd, cosT, nsinT, wa)

    return out_p[:B, :, :Cout]


def _reference(x, cosM, sinM, w_real, w_imag):
    """Pure-JAX complex reference mirroring the PyTorch forward()."""
    N = x.shape[1]
    V_fwd = (cosM - 1j * sinM).astype(jnp.complex64)              # (M, N)
    V_inv = jnp.conj(V_fwd).T                                      # (N, M)
    W = (w_real + 1j * w_imag).astype(jnp.complex64)               # (Cin, Cout, M)

    x_ft = jnp.einsum("mn,bnc->bmc", V_fwd, x.astype(jnp.complex64)) / N  # (B, M, Cin)
    x_ft = jnp.transpose(x_ft, (0, 2, 1))                                  # (B, Cin, M)
    out_ft = jnp.einsum("bix,iox->box", x_ft, W)                           # (B, Cout, M)
    out_ft = jnp.transpose(out_ft, (0, 2, 1))                              # (B, M, Cout)
    y = jnp.einsum("nm,bmc->bnc", V_inv, out_ft)                           # (B, N, Cout)
    return jnp.real(y)


if __name__ == "__main__":
    batch = 2
    n_points = 16
    in_channels = 4
    out_channels = 4
    modes = 5  # at most floor(n_points/2) + 1 = 9

    key = jax.random.PRNGKey(0)
    kx, kwr, kwi = jax.random.split(key, 3)

    # Input (batch, n_points, in_channels)
    x = jax.random.normal(kx, (batch, n_points, in_channels), dtype=jnp.float32)

    # VFT with equispaced grid (point_positions=None): theta_t = 2*pi*t/N,
    # X_mat[m,t] = m*theta_t.  The grid is shared across the batch, so the
    # operators are passed batch-free and stay resident in VMEM.
    theta = (jnp.arange(n_points, dtype=jnp.float32) / n_points) * 2.0 * np.pi  # (N,)
    m = jnp.arange(modes, dtype=jnp.float32)                                    # (M,)
    X_mat = m[:, None] * theta[None, :]                                         # (M, N)
    cosM = jnp.cos(X_mat)
    sinM = jnp.sin(X_mat)

    # Deterministic weights: scale * U[0,1) for real and imag parts
    # (matches shape/scale of torch.rand(in, out, modes, dtype=cfloat) * scale).
    scale = 1.0 / (in_channels * out_channels)
    w_real = scale * jax.random.uniform(
        kwr, (in_channels, out_channels, modes), dtype=jnp.float32)
    w_imag = scale * jax.random.uniform(
        kwi, (in_channels, out_channels, modes), dtype=jnp.float32)

    y = spectral_conv1d_smm(x, cosM, sinM, w_real, w_imag)
    y = jax.block_until_ready(y)

    y_ref = _reference(x, cosM, sinM, w_real, w_imag)
    np.testing.assert_allclose(np.asarray(y), np.asarray(y_ref), rtol=1e-4, atol=1e-5)

    print("KERNEL_OK")
</pallas_src>

<mosaic_0001>
module attributes {stable_mosaic.version = 11 : i64} {
  func.func @_spectral_conv_kernel(%arg0: i32, %arg1: memref<2x16x128xf32, #tpu.memory_space<vmem>>, %arg2: memref<16x16xf32, #tpu.memory_space<vmem>>, %arg3: memref<16x8xf32, #tpu.memory_space<vmem>>, %arg4: memref<16x8xf32, #tpu.memory_space<vmem>>, %arg5: memref<16x128x256xf32, #tpu.memory_space<vmem>>, %arg6: memref<2x16x128xf32, #tpu.memory_space<vmem>>) attributes {dimension_semantics = [#tpu.dimension_semantics<parallel>], iteration_bounds = array<i64: 1>, scalar_prefetch = 0 : i64, scratch_operands = 0 : i64, tpu.core_type = #tpu.core_type<tc>, window_params = [{transform_indices = @transform_0, window_bounds = array<i64: 2, 16, 128>}, {pipeline_mode = #tpu.pipeline_mode<synchronous>, transform_indices = @transform_1, window_bounds = array<i64: 16, 16>}, {pipeline_mode = #tpu.pipeline_mode<synchronous>, transform_indices = @transform_2, window_bounds = array<i64: 16, 8>}, {pipeline_mode = #tpu.pipeline_mode<synchronous>, transform_indices = @transform_3, window_bounds = array<i64: 16, 8>}, {pipeline_mode = #tpu.pipeline_mode<synchronous>, transform_indices = @transform_4, window_bounds = array<i64: 16, 128, 256>}, {transform_indices = @transform_5, window_bounds = array<i64: 2, 16, 128>}]} {
    %c0 = arith.constant 0 : index
    %c0_0 = arith.constant 0 : index
    %0 = vector.load %arg2[%c0, %c0_0] : memref<16x16xf32, #tpu.memory_space<vmem>>, vector<16x16xf32>
    %c0_1 = arith.constant 0 : index
    %c0_2 = arith.constant 0 : index
    %1 = vector.load %arg3[%c0_1, %c0_2] : memref<16x8xf32, #tpu.memory_space<vmem>>, vector<16x8xf32>
    %c0_3 = arith.constant 0 : index
    %c0_4 = arith.constant 0 : index
    %2 = vector.load %arg4[%c0_3, %c0_4] : memref<16x8xf32, #tpu.memory_space<vmem>>, vector<16x8xf32>
    %c0_5 = arith.constant 0 : index
    %c0_6 = arith.constant 0 : index
    %c0_7 = arith.constant 0 : index
    %3 = vector.load %arg5[%c0_5, %c0_6, %c0_7] : memref<16x128x256xf32, #tpu.memory_space<vmem>>, vector<16x128x256xf32>
    %c0_8 = arith.constant 0 : index
    %c0_9 = arith.constant 0 : index
    %c0_10 = arith.constant 0 : index
    %4 = vector.load %arg1[%c0_8, %c0_9, %c0_10] : memref<2x16x128xf32, #tpu.memory_space<vmem>>, vector<1x16x128xf32>
    %5 = vector.shape_cast %4 : vector<1x16x128xf32> to vector<16x128xf32>
    %cst = arith.constant dense<0.000000e+00> : vector<16x128xf32>
    %6 = tpu.matmul %0, %5, %cst {dimension_numbers = #tpu.dot_dimension_numbers<[1], [0], [0], [1], [0, 0, 1, 1], [], []>} : vector<16x16xf32>, vector<16x128xf32>, vector<16x128xf32> -> vector<16x128xf32>
    %7 = vector.shape_cast %6 : vector<16x128xf32> to vector<16x1x128xf32>
    "tpu.trace_start"() <{level = 10 : i32, message = "mri,mio->mro"}> : () -> ()
    %cst_11 = arith.constant dense<0.000000e+00> : vector<16x1x256xf32>
    %8 = tpu.matmul %7, %3, %cst_11 {dimension_numbers = #tpu.dot_dimension_numbers<[2], [1], [1], [2], [0, 0, 0, 1, 1, 2], [0], [0]>} : vector<16x1x128xf32>, vector<16x128x256xf32>, vector<16x1x256xf32> -> vector<16x1x256xf32>
    "tpu.trace_stop"() : () -> ()
    %cst_12 = arith.constant dense<0.000000e+00> : vector<16x256xf32>
    %9 = vector.multi_reduction <add>, %8, %cst_12 [1] : vector<16x1x256xf32> to vector<16x256xf32>
    %10 = vector.extract_strided_slice %9 {offsets = [0, 0], sizes = [8, 256], strides = [1, 1]} : vector<16x256xf32> to vector<8x256xf32>
    %11 = vector.extract_strided_slice %9 {offsets = [8, 0], sizes = [8, 256], strides = [1, 1]} : vector<16x256xf32> to vector<8x256xf32>
    %12 = arith.addf %10, %11 : vector<8x256xf32>
    %13 = vector.extract_strided_slice %12 {offsets = [0, 0], sizes = [8, 128], strides = [1, 1]} : vector<8x256xf32> to vector<8x128xf32>
    %14 = vector.extract_strided_slice %12 {offsets = [0, 128], sizes = [8, 128], strides = [1, 1]} : vector<8x256xf32> to vector<8x128xf32>
    %cst_13 = arith.constant dense<0.000000e+00> : vector<16x128xf32>
    %15 = tpu.matmul %1, %13, %cst_13 {dimension_numbers = #tpu.dot_dimension_numbers<[1], [0], [0], [1], [0, 0, 1, 1], [], []>} : vector<16x8xf32>, vector<8x128xf32>, vector<16x128xf32> -> vector<16x128xf32>
    %cst_14 = arith.constant dense<0.000000e+00> : vector<16x128xf32>
    %16 = tpu.matmul %2, %14, %cst_14 {dimension_numbers = #tpu.dot_dimension_numbers<[1], [0], [0], [1], [0, 0, 1, 1], [], []>} : vector<16x8xf32>, vector<8x128xf32>, vector<16x128xf32> -> vector<16x128xf32>
    %17 = arith.addf %15, %16 : vector<16x128xf32>
    %c0_15 = arith.constant 0 : index
    %c0_16 = arith.constant 0 : index
    %c0_17 = arith.constant 0 : index
    %18 = vector.load %arg6[%c0_15, %c0_16, %c0_17] : memref<2x16x128xf32, #tpu.memory_space<vmem>>, vector<1x16x128xf32>
    %19 = vector.shape_cast %18 : vector<1x16x128xf32> to vector<16x128xf32>
    %20 = vector.shape_cast %17 : vector<16x128xf32> to vector<1x16x128xf32>
    tpu.vector_store %arg6[%c0_15, %c0_16, %c0_17], %20 {strides = array<i32>} : memref<2x16x128xf32, #tpu.memory_space<vmem>>, vector<1x16x128xf32>,
    %c1 = arith.constant 1 : index
    %c0_18 = arith.constant 0 : index
    %c0_19 = arith.constant 0 : index
    %21 = vector.load %arg1[%c1, %c0_18, %c0_19] : memref<2x16x128xf32, #tpu.memory_space<vmem>>, vector<1x16x128xf32>
    %22 = vector.shape_cast %21 : vector<1x16x128xf32> to vector<16x128xf32>
    %cst_20 = arith.constant dense<0.000000e+00> : vector<16x128xf32>
    %23 = tpu.matmul %0, %22, %cst_20 {dimension_numbers = #tpu.dot_dimension_numbers<[1], [0], [0], [1], [0, 0, 1, 1], [], []>} : vector<16x16xf32>, vector<16x128xf32>, vector<16x128xf32> -> vector<16x128xf32>
    %24 = vector.shape_cast %23 : vector<16x128xf32> to vector<16x1x128xf32>
    "tpu.trace_start"() <{level = 10 : i32, message = "mri,mio->mro"}> : () -> ()
    %cst_21 = arith.constant dense<0.000000e+00> : vector<16x1x256xf32>
    %25 = tpu.matmul %24, %3, %cst_21 {dimension_numbers = #tpu.dot_dimension_numbers<[2], [1], [1], [2], [0, 0, 0, 1, 1, 2], [0], [0]>} : vector<16x1x128xf32>, vector<16x128x256xf32>, vector<16x1x256xf32> -> vector<16x1x256xf32>
    "tpu.trace_stop"() : () -> ()
    %cst_22 = arith.constant dense<0.000000e+00> : vector<16x256xf32>
    %26 = vector.multi_reduction <add>, %25, %cst_22 [1] : vector<16x1x256xf32> to vector<16x256xf32>
    %27 = vector.extract_strided_slice %26 {offsets = [0, 0], sizes = [8, 256], strides = [1, 1]} : vector<16x256xf32> to vector<8x256xf32>
    %28 = vector.extract_strided_slice %26 {offsets = [8, 0], sizes = [8, 256], strides = [1, 1]} : vector<16x256xf32> to vector<8x256xf32>
    %29 = arith.addf %27, %28 : vector<8x256xf32>
    %30 = vector.extract_strided_slice %29 {offsets = [0, 0], sizes = [8, 128], strides = [1, 1]} : vector<8x256xf32> to vector<8x128xf32>
    %31 = vector.extract_strided_slice %29 {offsets = [0, 128], sizes = [8, 128], strides = [1, 1]} : vector<8x256xf32> to vector<8x128xf32>
    %cst_23 = arith.constant dense<0.000000e+00> : vector<16x128xf32>
    %32 = tpu.matmul %1, %30, %cst_23 {dimension_numbers = #tpu.dot_dimension_numbers<[1], [0], [0], [1], [0, 0, 1, 1], [], []>} : vector<16x8xf32>, vector<8x128xf32>, vector<16x128xf32> -> vector<16x128xf32>
    %cst_24 = arith.constant dense<0.000000e+00> : vector<16x128xf32>
    %33 = tpu.matmul %2, %31, %cst_24 {dimension_numbers = #tpu.dot_dimension_numbers<[1], [0], [0], [1], [0, 0, 1, 1], [], []>} : vector<16x8xf32>, vector<8x128xf32>, vector<16x128xf32> -> vector<16x128xf32>
    %34 = arith.addf %32, %33 : vector<16x128xf32>
    %c1_25 = arith.constant 1 : index
    %c0_26 = arith.constant 0 : index
    %c0_27 = arith.constant 0 : index
    %35 = vector.load %arg6[%c1_25, %c0_26, %c0_27] : memref<2x16x128xf32, #tpu.memory_space<vmem>>, vector<1x16x128xf32>
    %36 = vector.shape_cast %35 : vector<1x16x128xf32> to vector<16x128xf32>
    %37 = vector.shape_cast %34 : vector<16x128xf32> to vector<1x16x128xf32>
    tpu.vector_store %arg6[%c1_25, %c0_26, %c0_27], %37 {strides = array<i32>} : memref<2x16x128xf32, #tpu.memory_space<vmem>>, vector<1x16x128xf32>,
    return
  }
  func.func @transform_0(%arg0: i32) -> (i32, i32, i32) {
    %c0_i32 = arith.constant 0 : i32
    %c0_i32_0 = arith.constant 0 : i32
    %c0_i32_1 = arith.constant 0 : i32
    return %arg0, %c0_i32, %c0_i32_0 : i32, i32, i32
  }
  func.func @transform_1(%arg0: i32) -> (i32, i32) {
    %c0_i32 = arith.constant 0 : i32
    %c0_i32_0 = arith.constant 0 : i32
    %c0_i32_1 = arith.constant 0 : i32
    return %c0_i32, %c0_i32_0 : i32, i32
  }
  func.func @transform_2(%arg0: i32) -> (i32, i32) {
    %c0_i32 = arith.constant 0 : i32
    %c0_i32_0 = arith.constant 0 : i32
    %c0_i32_1 = arith.constant 0 : i32
    return %c0_i32, %c0_i32_0 : i32, i32
  }
  func.func @transform_3(%arg0: i32) -> (i32, i32) {
    %c0_i32 = arith.constant 0 : i32
    %c0_i32_0 = arith.constant 0 : i32
    %c0_i32_1 = arith.constant 0 : i32
    return %c0_i32, %c0_i32_0 : i32, i32
  }
  func.func @transform_4(%arg0: i32) -> (i32, i32, i32) {
    %c0_i32 = arith.constant 0 : i32
    %c0_i32_0 = arith.constant 0 : i32
    %c0_i32_1 = arith.constant 0 : i32
    %c0_i32_2 = arith.constant 0 : i32
    return %c0_i32, %c0_i32_0, %c0_i32_1 : i32, i32, i32
  }
  func.func @transform_5(%arg0: i32) -> (i32, i32, i32) {
    %c0_i32 = arith.constant 0 : i32
    %c0_i32_0 = arith.constant 0 : i32
    %c0_i32_1 = arith.constant 0 : i32
    return %arg0, %c0_i32, %c0_i32_0 : i32, i32, i32
  }
}

</mosaic_0001>

<llo_original>
// kernel: tpu_custom_call.1
$region0: #{tpu_custom_call.1}
  #allocation0 [shape = 'u32[]', space=smem, size = 0x4, offset = 0x4, fixed_abs, tag = 'smem constant byte address 0x4 - core index']
  #allocation1 [shape = 'u32[72,128]{1,0:T(1,128)}', space=vmem, size = 0x9000, scoped, tag = 'internal scratch']
  %s0 = inlined_call_operand.hbm [shape: f32[2,16,128], index: 0, kind: input, shape index: {}]
  %s1 = inlined_call_operand.hbm [shape: f32[16,16], index: 1, kind: input, shape index: {}]
  %s2 = inlined_call_operand.vmem [shape: f32[16,8], index: 2, kind: input, shape index: {}]
  %s3 = inlined_call_operand.vmem [shape: f32[16,8], index: 3, kind: input, shape index: {}]
  %s4 = inlined_call_operand.hbm [shape: f32[16,128,256], index: 4, kind: input, shape index: {}]
  %s5 = inlined_call_operand.hbm [shape: f32[2,16,128], index: 5, kind: output, shape index: {}]
  %s6 = sld [smem:[#allocation0]]
  $region42: #{tpu_custom_call.1} parent=0
    _
  %s8 = ssub.s32 1, %s6
  %s9 = scalar_select 0, %s8, %s6
  $region1: #{tpu_custom_call.1} parent=0
    #allocation2 [shape = 'u8[16384]{0}', space=vmem, size = 0x4000, scoped, tag = 'input window, operand 0, single buffered']
    #allocation3 [shape = 's32[1]{0}', space=sflag, size = 0x4, scoped, tag = 'scoped memory for tpu_custom_call.1']
    #allocation4 [shape = 's32[1]{0}', space=sflag, size = 0x4, scoped, tag = 'scoped memory for tpu_custom_call.1']
    #allocation5 [shape = 'u8[8192]{0}', space=vmem, size = 0x2000, scoped, tag = 'input window, operand 1, single buffered']
    #allocation6 [shape = 's32[1]{0}', space=sflag, size = 0x4, scoped, tag = 'scoped memory for tpu_custom_call.1']
    #allocation7 [shape = 'u8[2097152]{0}', space=vmem, size = 0x200000, scoped, tag = 'input window, operand 4, single buffered']
    #allocation8 [shape = 'u8[16384]{0}', space=vmem, size = 0x4000, scoped, tag = 'output window, operand 0, single buffered']
    %10 = vsyncpa [#allocation3], 0
    %11 = vsyncpa [#allocation6], 0
    %12 = vsyncpa [#allocation4], 0
    // Predicated region
    $region2: #{tpu_custom_call.1} parent=1 // pred_check
      _
    $region3: #{tpu_custom_call.1} parent=1 // pred_check_branch
      %14 = sbr.rel (0) target = $region5
    $region4: #{tpu_custom_call.1} parent=1 // pred_region
      %16 = vsyncadd [#allocation3], 0
      %s17 = sshll.u32 %s0, 4
      %s18 = int_to_ptr.hbm [resolvable:$true] %s17
      %s19 = sshll.u32 [#allocation2], 4
      %s20 = int_to_ptr.vmem [resolvable:$true] %s19
      %25 = dma.hbm_to_vmem [thread:$0]  %s18, 512, %s20, [#allocation3], 128, 128, 8
    $region5: #{tpu_custom_call.1} parent=1 // pred_fallthru
      _
    // Predicated region
    $region6: #{tpu_custom_call.1} parent=1 // pred_check
      _
    $region7: #{tpu_custom_call.1} parent=1 // pred_check_branch
      %27 = sbr.rel (0) target = $region9
    $region8: #{tpu_custom_call.1} parent=1 // pred_region
      %29 = vsyncadd [#allocation6], 0
      %s30 = sshll.u32 %s1, 4
      %s31 = int_to_ptr.hbm [resolvable:$true] %s30
      %s32 = sshll.u32 [#allocation5], 4
      %s33 = int_to_ptr.vmem [resolvable:$true] %s32
      %38 = dma.hbm_to_vmem [thread:$0]  %s31, 256, %s33, [#allocation6], 128, 128, 8
    $region9: #{tpu_custom_call.1} parent=1 // pred_fallthru
      _
    // Predicated region
    $region10: #{tpu_custom_call.1} parent=1 // pred_check
      _
    $region11: #{tpu_custom_call.1} parent=1 // pred_check_branch
      %40 = sbr.rel (0) target = $region13
    $region12: #{tpu_custom_call.1} parent=1 // pred_region
      _
    $region13: #{tpu_custom_call.1} parent=1 // pred_fallthru
      _
    // Predicated region
    $region14: #{tpu_custom_call.1} parent=1 // pred_check
      _
    $region15: #{tpu_custom_call.1} parent=1 // pred_check_branch
      %42 = sbr.rel (0) target = $region17
    $region16: #{tpu_custom_call.1} parent=1 // pred_region
      _
    $region17: #{tpu_custom_call.1} parent=1 // pred_fallthru
      _
    // Predicated region
    $region18: #{tpu_custom_call.1} parent=1 // pred_check
      _
    $region19: #{tpu_custom_call.1} parent=1 // pred_check_branch
      %44 = sbr.rel (0) target = $region21
    $region20: #{tpu_custom_call.1} parent=1 // pred_region
      %46 = vsyncadd [#allocation6], 0
      %s47 = sshll.u32 %s4, 4
      %s48 = int_to_ptr.hbm [resolvable:$true] %s47
      %s49 = sshll.u32 [#allocation7], 4
      %s50 = int_to_ptr.vmem [resolvable:$true] %s49
      %55 = dma.hbm_to_vmem [thread:$0]  %s48, 65536, %s50, [#allocation6], 256, 256, 16
    $region21: #{tpu_custom_call.1} parent=1 // pred_fallthru
      _
    // Predicated region
    $region22: #{tpu_custom_call.1} parent=1 // pred_check
      _
    $region23: #{tpu_custom_call.1} parent=1 // pred_check_branch
      %57 = sbr.rel (0) target = $region25
    $region24: #{tpu_custom_call.1} parent=1 // pred_region
      %59 = dma.done [#allocation3], 512
    $region25: #{tpu_custom_call.1} parent=1 // pred_fallthru
      _
    // Predicated region
    $region26: #{tpu_custom_call.1} parent=1 // pred_check
      _
    $region27: #{tpu_custom_call.1} parent=1 // pred_check_branch
      %61 = sbr.rel (0) target = $region29
    $region28: #{tpu_custom_call.1} parent=1 // pred_region
      %63 = dma.done [#allocation6], 256
    $region29: #{tpu_custom_call.1} parent=1 // pred_fallthru
      _
    // Predicated region
    $region30: #{tpu_custom_call.1} parent=1 // pred_check
      _
    $region31: #{tpu_custom_call.1} parent=1 // pred_check_branch
      %65 = sbr.rel (0) target = $region33
    $region32: #{tpu_custom_call.1} parent=1 // pred_region
      %67 = dma.done [#allocation6], 65536
    $region33: #{tpu_custom_call.1} parent=1 // pred_fallthru
      _
    %v68 = vld [vmem:[#allocation5] sm:$0xff]
    %v69 = vld [vmem:[#allocation5 + $0x8] sm:$0xff]
    %v70 = vld [vmem:[%s2] sm:$0xff]
    %v71 = vld [vmem:[%s2 + $0x8] sm:$0xff]
    %v72 = vld [vmem:[%s3] sm:$0xff]
    %v73 = vld [vmem:[%s3 + $0x8] sm:$0xff]
    %v74 = vld [vmem:[#allocation7] sm:$0xff]
    %v75 = vld [vmem:[#allocation7 + $0x8] sm:$0xff]
    %v76 = vld [vmem:[#allocation7 + $0x10] sm:$0xff]
    %v77 = vld [vmem:[#allocation7 + $0x18] sm:$0xff]
    %v78 = vld [vmem:[#allocation7 + $0x20] sm:$0xff]
    %v79 = vld [vmem:[#allocation7 + $0x28] sm:$0xff]
    %v80 = vld [vmem:[#allocation7 + $0x30] sm:$0xff]
    %v81 = vld [vmem:[#allocation7 + $0x38] sm:$0xff]
    %v82 = vld [vmem:[#allocation7 + $0x40] sm:$0xff]
    %v83 = vld [vmem:[#allocation7 + $0x48] sm:$0xff]
    %v84 = vld [vmem:[#allocation7 + $0x50] sm:$0xff]
    %v85 = vld [vmem:[#allocation7 + $0x58] sm:$0xff]
    %v86 = vld [vmem:[#allocation7 + $0x60] sm:$0xff]
    %v87 = vld [vmem:[#allocation7 + $0x68] sm:$0xff]
    %v88 = vld [vmem:[#allocation7 + $0x70] sm:$0xff]
    %v89 = vld [vmem:[#allocation7 + $0x78] sm:$0xff]
    %v90 = vld [vmem:[#allocation7 + $0x80] sm:$0xff]
    %v91 = vld [vmem:[#allocation7 + $0x88] sm:$0xff]
    %v92 = vld [vmem:[#allocation7 + $0x90] sm:$0xff]
    %v93 = vld [vmem:[#allocation7 + $0x98] sm:$0xff]
    %v94 = vld [vmem:[#allocation7 + $0xa0] sm:$0xff]
    %v95 = vld [vmem:[#allocation7 + $0xa8] sm:$0xff]
    %v96 = vld [vmem:[#allocation7 + $0xb0] sm:$0xff]
    %v97 = vld [vmem:[#allocation7 + $0xb8] sm:$0xff]
    %v98 = vld [vmem:[#allocation7 + $0xc0] sm:$0xff]
    %v99 = vld [vmem:[#allocation7 + $0xc8] sm:$0xff]
    %v100 = vld [vmem:[#allocation7 + $0xd0] sm:$0xff]
    %v101 = vld [vmem:[#allocation7 + $0xd8] sm:$0xff]
    %v102 = vld [vmem:[#allocation7 + $0xe0] sm:$0xff]
    %v103 = vld [vmem:[#allocation7 + $0xe8] sm:$0xff]
    %v104 = vld [vmem:[#allocation7 + $0xf0] sm:$0xff]
    %v105 = vld [vmem:[#allocation7 + $0xf8] sm:$0xff]
    %v106 = vld [vmem:[#allocation7 + $0x100] sm:$0xff]
    %v107 = vld [vmem:[#allocation7 + $0x108] sm:$0xff]
    %v108 = vld [vmem:[#allocation7 + $0x110] sm:$0xff]
    %v109 = vld [vmem:[#allocation7 + $0x118] sm:$0xff]
    %v110 = vld [vmem:[#allocation7 + $0x120] sm:$0xff]
    %v111 = vld [vmem:[#allocation7 + $0x128] sm:$0xff]
    %v112 = vld [vmem:[#allocation7 + $0x130] sm:$0xff]
    %v113 = vld [vmem:[#allocation7 + $0x138] sm:$0xff]
    %v114 = vld [vmem:[#allocation7 + $0x140] sm:$0xff]
    %v115 = vld [vmem:[#allocation7 + $0x148] sm:$0xff]
    %v116 = vld [vmem:[#allocation7 + $0x150] sm:$0xff]
    %v117 = vld [vmem:[#allocation7 + $0x158] sm:$0xff]
    %v118 = vld [vmem:[#allocation7 + $0x160] sm:$0xff]
    %v119 = vld [vmem:[#allocation7 + $0x168] sm:$0xff]
    %v120 = vld [vmem:[#allocation7 + $0x170] sm:$0xff]
    %v121 = vld [vmem:[#allocation7 + $0x178] sm:$0xff]
    %v122 = vld [vmem:[#allocation7 + $0x180] sm:$0xff]
    %v123 = vld [vmem:[#allocation7 + $0x188] sm:$0xff]
    %v124 = vld [vmem:[#allocation7 + $0x190] sm:$0xff]
    %v125 = vld [vmem:[#allocation7 + $0x198] sm:$0xff]
    %v126 = vld [vmem:[#allocation7 + $0x1a0] sm:$0xff]
    %v127 = vld [vmem:[#allocation7 + $0x1a8] sm:$0xff]
    %v128 = vld [vmem:[#allocation7 + $0x1b0] sm:$0xff]
    %v129 = vld [vmem:[#allocation7 + $0x1b8] sm:$0xff]
    %v130 = vld [vmem:[#allocation7 + $0x1c0] sm:$0xff]
    %v131 = vld [vmem:[#allocation7 + $0x1c8] sm:$0xff]
    %v132 = vld [vmem:[#allocation7 + $0x1d0] sm:$0xff]
    %v133 = vld [vmem:[#allocation7 + $0x1d8] sm:$0xff]
    %v134 = vld [vmem:[#allocation7 + $0x1e0] sm:$0xff]
    %v135 = vld [vmem:[#allocation7 + $0x1e8] sm:$0xff]
    %v136 = vld [vmem:[#allocation7 + $0x1f0] sm:$0xff]
    %v137 = vld [vmem:[#allocation7 + $0x1f8] sm:$0xff]
    %v138 = vld [vmem:[#allocation7 + $0x200] sm:$0xff]
    %v139 = vld [vmem:[#allocation7 + $0x208] sm:$0xff]
    %v140 = vld [vmem:[#allocation7 + $0x210] sm:$0xff]
    %v141 = vld [vmem:[#allocation7 + $0x218] sm:$0xff]
    %v142 = vld [vmem:[#allocation7 + $0x220] sm:$0xff]
    %v143 = vld [vmem:[#allocation7 + $0x228] sm:$0xff]
    %v144 = vld [vmem:[#allocation7 + $0x230] sm:$0xff]
    %v145 = vld [vmem:[#allocation7 + $0x238] sm:$0xff]
    %v146 = vld [vmem:[#allocation7 + $0x240] sm:$0xff]
    %v147 = vld [vmem:[#allocation7 + $0x248] sm:$0xff]
    %v148 = vld [vmem:[#allocation7 + $0x250] sm:$0xff]
    %v149 = vld [vmem:[#allocation7 + $0x258] sm:$0xff]
    %v150 = vld [vmem:[#allocation7 + $0x260] sm:$0xff]
    %v151 = vld [vmem:[#allocation7 + $0x268] sm:$0xff]
    %v152 = vld [vmem:[#allocation7 + $0x270] sm:$0xff]
    %v153 = vld [vmem:[#allocation7 + $0x278] sm:$0xff]
    %v154 = vld [vmem:[#allocation7 + $0x280] sm:$0xff]
    %v155 = vld [vmem:[#allocation7 + $0x288] sm:$0xff]
    %v156 = vld [vmem:[#allocation7 + $0x290] sm:$0xff]
    %v157 = vld [vmem:[#allocation7 + $0x298] sm:$0xff]
    %v158 = vld [vmem:[#allocation7 + $0x2a0] sm:$0xff]
    %v159 = vld [vmem:[#allocation7 + $0x2a8] sm:$0xff]
    %v160 = vld [vmem:[#allocation7 + $0x2b0] sm:$0xff]
    %v161 = vld [vmem:[#allocation7 + $0x2b8] sm:$0xff]
    %v162 = vld [vmem:[#allocation7 + $0x2c0] sm:$0xff]
    %v163 = vld [vmem:[#allocation7 + $0x2c8] sm:$0xff]
    %v164 = vld [vmem:[#allocation7 + $0x2d0] sm:$0xff]
    %v165 = vld [vmem:[#allocation7 + $0x2d8] sm:$0xff]
    %v166 = vld [vmem:[#allocation7 + $0x2e0] sm:$0xff]
    %v167 = vld [vmem:[#allocation7 + $0x2e8] sm:$0xff]
    %v168 = vld [vmem:[#allocation7 + $0x2f0] sm:$0xff]
    %v169 = vld [vmem:[#allocation7 + $0x2f8] sm:$0xff]
    %v170 = vld [vmem:[#allocation7 + $0x300] sm:$0xff]
    %v171 = vld [vmem:[#allocation7 + $0x308] sm:$0xff]
    %v172 = vld [vmem:[#allocation7 + $0x310] sm:$0xff]
    %v173 = vld [vmem:[#allocation7 + $0x318] sm:$0xff]
    %v174 = vld [vmem:[#allocation7 + $0x320] sm:$0xff]
    %v175 = vld [vmem:[#allocation7 + $0x328] sm:$0xff]
    %v176 = vld [vmem:[#allocation7 + $0x330] sm:$0xff]
    %v177 = vld [vmem:[#allocation7 + $0x338] sm:$0xff]
    %v178 = vld [vmem:[#allocation7 + $0x340] sm:$0xff]
    %v179 = vld [vmem:[#allocation7 + $0x348] sm:$0xff]
    %v180 = vld [vmem:[#allocation7 + $0x350] sm:$0xff]
    %v181 = vld [vmem:[#allocation7 + $0x358] sm:$0xff]
    %v182 = vld [vmem:[#allocation7 + $0x360] sm:$0xff]
    %v183 = vld [vmem:[#allocation7 + $0x368] sm:$0xff]
    %v184 = vld [vmem:[#allocation7 + $0x370] sm:$0xff]
    %v185 = vld [vmem:[#allocation7 + $0x378] sm:$0xff]
    %v186 = vld [vmem:[#allocation7 + $0x380] sm:$0xff]
    %v187 = vld [vmem:[#allocation7 + $0x388] sm:$0xff]
    %v188 = vld [vmem:[#allocation7 + $0x390] sm:$0xff]
    %v189 = vld [vmem:[#allocation7 + $0x398] sm:$0xff]
    %v190 = vld [vmem:[#allocation7 + $0x3a0] sm:$0xff]
    %v191 = vld [vmem:[#allocation7 + $0x3a8] sm:$0xff]
    %v192 = vld [vmem:[#allocation7 + $0x3b0] sm:$0xff]
    %v193 = vld [vmem:[#allocation7 + $0x3b8] sm:$0xff]
    %v194 = vld [vmem:[#allocation7 + $0x3c0] sm:$0xff]
    %v195 = vld [vmem:[#allocation7 + $0x3c8] sm:$0xff]
    %v196 = vld [vmem:[#allocation7 + $0x3d0] sm:$0xff]
    %v197 = vld [vmem:[#allocation7 + $0x3d8] sm:$0xff]
    %v198 = vld [vmem:[#allocation7 + $0x3e0] sm:$0xff]
    %v199 = vld [vmem:[#allocation7 + $0x3e8] sm:$0xff]
    %v200 = vld [vmem:[#allocation7 + $0x3f0] sm:$0xff]
    %v201 = vld [vmem:[#allocation7 + $0x3f8] sm:$0xff]
    %v202 = vld [vmem:[#allocation7 + $0x400] sm:$0xff]
    %v203 = vld [vmem:[#allocation7 + $0x408] sm:$0xff]
    %v204 = vld [vmem:[#allocation7 + $0x410] sm:$0xff]
    %v205 = vld [vmem:[#allocation7 + $0x418] sm:$0xff]
    %v206 = vld [vmem:[#allocation7 + $0x420] sm:$0xff]
    %v207 = vld [vmem:[#allocation7 + $0x428] sm:$0xff]
    %v208 = vld [vmem:[#allocation7 + $0x430] sm:$0xff]
    %v209 = vld [vmem:[#allocation7 + $0x438] sm:$0xff]
    %v210 = vld [vmem:[#allocation7 + $0x440] sm:$0xff]
    %v211 = vld [vmem:[#allocation7 + $0x448] sm:$0xff]
    %v212 = vld [vmem:[#allocation7 + $0x450] sm:$0xff]
    %v213 = vld [vmem:[#allocation7 + $0x458] sm:$0xff]
    %v214 = vld [vmem:[#allocation7 + $0x460] sm:$0xff]
    %v215 = vld [vmem:[#allocation7 + $0x468] sm:$0xff]
    %v216 = vld [vmem:[#allocation7 + $0x470] sm:$0xff]
    %v217 = vld [vmem:[#allocation7 + $0x478] sm:$0xff]
    %v218 = vld [vmem:[#allocation7 + $0x480] sm:$0xff]
    %v219 = vld [vmem:[#allocation7 + $0x488] sm:$0xff]
    %v220 = vld [vmem:[#allocation7 + $0x490] sm:$0xff]
    %v221 = vld [vmem:[#allocation7 + $0x498] sm:$0xff]
    %v222 = vld [vmem:[#allocation7 + $0x4a0] sm:$0xff]
    %v223 = vld [vmem:[#allocation7 + $0x4a8] sm:$0xff]
    %v224 = vld [vmem:[#allocation7 + $0x4b0] sm:$0xff]
    %v225 = vld [vmem:[#allocation7 + $0x4b8] sm:$0xff]
    %v226 = vld [vmem:[#allocation7 + $0x4c0] sm:$0xff]
    %v227 = vld [vmem:[#allocation7 + $0x4c8] sm:$0xff]
    %v228 = vld [vmem:[#allocation7 + $0x4d0] sm:$0xff]
    %v229 = vld [vmem:[#allocation7 + $0x4d8] sm:$0xff]
    %v230 = vld [vmem:[#allocation7 + $0x4e0] sm:$0xff]
    %v231 = vld [vmem:[#allocation7 + $0x4e8] sm:$0xff]
    %v232 = vld [vmem:[#allocation7 + $0x4f0] sm:$0xff]
    %v233 = vld [vmem:[#allocation7 + $0x4f8] sm:$0xff]
    %v234 = vld [vmem:[#allocation7 + $0x500] sm:$0xff]
    %v235 = vld [vmem:[#allocation7 + $0x508] sm:$0xff]
    %v236 = vld [vmem:[#allocation7 + $0x510] sm:$0xff]
    %v237 = vld [vmem:[#allocation7 + $0x518] sm:$0xff]
    %v238 = vld [vmem:[#allocation7 + $0x520] sm:$0xff]
    %v239 = vld [vmem:[#allocation7 + $0x528] sm:$0xff]
    %v240 = vld [vmem:[#allocation7 + $0x530] sm:$0xff]
    %v241 = vld [vmem:[#allocation7 + $0x538] sm:$0xff]
    %v242 = vld [vmem:[#allocation7 + $0x540] sm:$0xff]
    %v243 = vld [vmem:[#allocation7 + $0x548] sm:$0xff]
    %v244 = vld [vmem:[#allocation7 + $0x550] sm:$0xff]
    %v245 = vld [vmem:[#allocation7 + $0x558] sm:$0xff]
    %v246 = vld [vmem:[#allocation7 + $0x560] sm:$0xff]
    %v247 = vld [vmem:[#allocation7 + $0x568] sm:$0xff]
    %v248 = vld [vmem:[#allocation7 + $0x570] sm:$0xff]
    %v249 = vld [vmem:[#allocation7 + $0x578] sm:$0xff]
    %v250 = vld [vmem:[#allocation7 + $0x580] sm:$0xff]
    %v251 = vld [vmem:[#allocation7 + $0x588] sm:$0xff]
    %v252 = vld [vmem:[#allocation7 + $0x590] sm:$0xff]
    %v253 = vld [vmem:[#allocation7 + $0x598] sm:$0xff]
    %v254 = vld [vmem:[#allocation7 + $0x5a0] sm:$0xff]
    %v255 = vld [vmem:[#allocation7 + $0x5a8] sm:$0xff]
    %v256 = vld [vmem:[#allocation7 + $0x5b0] sm:$0xff]
    %v257 = vld [vmem:[#allocation7 + $0x5b8] sm:$0xff]
    %v258 = vld [vmem:[#allocation7 + $0x5c0] sm:$0xff]
    %v259 = vld [vmem:[#allocation7 + $0x5c8] sm:$0xff]
    %v260 = vld [vmem:[#allocation7 + $0x5d0] sm:$0xff]
    %v261 = vld [vmem:[#allocation7 + $0x5d8] sm:$0xff]
    %v262 = vld [vmem:[#allocation7 + $0x5e0] sm:$0xff]
    %v263 = vld [vmem:[#allocation7 + $0x5e8] sm:$0xff]
    %v264 = vld [vmem:[#allocation7 + $0x5f0] sm:$0xff]
    %v265 = vld [vmem:[#allocation7 + $0x5f8] sm:$0xff]
    %v266 = vld [vmem:[#allocation7 + $0x600] sm:$0xff]
    %v267 = vld [vmem:[#allocation7 + $0x608] sm:$0xff]
    %v268 = vld [vmem:[#allocation7 + $0x610] sm:$0xff]
    %v269 = vld [vmem:[#allocation7 + $0x618] sm:$0xff]
    %v270 = vld [vmem:[#allocation7 + $0x620] sm:$0xff]
    %v271 = vld [vmem:[#allocation7 + $0x628] sm:$0xff]
    %v272 = vld [vmem:[#allocation7 + $0x630] sm:$0xff]
    %v273 = vld [vmem:[#allocation7 + $0x638] sm:$0xff]
    %v274 = vld [vmem:[#allocation7 + $0x640] sm:$0xff]
    %v275 = vld [vmem:[#allocation7 + $0x648] sm:$0xff]
    %v276 = vld [vmem:[#allocation7 + $0x650] sm:$0xff]
    %v277 = vld [vmem:[#allocation7 + $0x658] sm:$0xff]
    %v278 = vld [vmem:[#allocation7 + $0x660] sm:$0xff]
    %v279 = vld [vmem:[#allocation7 + $0x668] sm:$0xff]
    %v280 = vld [vmem:[#allocation7 + $0x670] sm:$0xff]
    %v281 = vld [vmem:[#allocation7 + $0x678] sm:$0xff]
    %v282 = vld [vmem:[#allocation7 + $0x680] sm:$0xff]
    %v283 = vld [vmem:[#allocation7 + $0x688] sm:$0xff]
    %v284 = vld [vmem:[#allocation7 + $0x690] sm:$0xff]
    %v285 = vld [vmem:[#allocation7 + $0x698] sm:$0xff]
    %v286 = vld [vmem:[#allocation7 + $0x6a0] sm:$0xff]
    %v287 = vld [vmem:[#allocation7 + $0x6a8] sm:$0xff]
    %v288 = vld [vmem:[#allocation7 + $0x6b0] sm:$0xff]
    %v289 = vld [vmem:[#allocation7 + $0x6b8] sm:$0xff]
    %v290 = vld [vmem:[#allocation7 + $0x6c0] sm:$0xff]
    %v291 = vld [vmem:[#allocation7 + $0x6c8] sm:$0xff]
    %v292 = vld [vmem:[#allocation7 + $0x6d0] sm:$0xff]
    %v293 = vld [vmem:[#allocation7 + $0x6d8] sm:$0xff]
    %v294 = vld [vmem:[#allocation7 + $0x6e0] sm:$0xff]
    %v295 = vld [vmem:[#allocation7 + $0x6e8] sm:$0xff]
    %v296 = vld [vmem:[#allocation7 + $0x6f0] sm:$0xff]
    %v297 = vld [vmem:[#allocation7 + $0x6f8] sm:$0xff]
    %v298 = vld [vmem:[#allocation7 + $0x700] sm:$0xff]
    %v299 = vld [vmem:[#allocation7 + $0x708] sm:$0xff]
    %v300 = vld [vmem:[#allocation7 + $0x710] sm:$0xff]
    %v301 = vld [vmem:[#allocation7 + $0x718] sm:$0xff]
    %v302 = vld [vmem:[#allocation7 + $0x720] sm:$0xff]
    %v303 = vld [vmem:[#allocation7 + $0x728] sm:$0xff]
    %v304 = vld [vmem:[#allocation7 + $0x730] sm:$0xff]
    %v305 = vld [vmem:[#allocation7 + $0x738] sm:$0xff]
    %v306 = vld [vmem:[#allocation7 + $0x740] sm:$0xff]
    %v307 = vld [vmem:[#allocation7 + $0x748] sm:$0xff]
    %v308 = vld [vmem:[#allocation7 + $0x750] sm:$0xff]
    %v309 = vld [vmem:[#allocation7 + $0x758] sm:$0xff]
    %v310 = vld [vmem:[#allocation7 + $0x760] sm:$0xff]
    %v311 = vld [vmem:[#allocation7 + $0x768] sm:$0xff]
    %v312 = vld [vmem:[#allocation7 + $0x770] sm:$0xff]
    %v313 = vld [vmem:[#allocation7 + $0x778] sm:$0xff]
    %v314 = vld [vmem:[#allocation7 + $0x780] sm:$0xff]
    %v315 = vld [vmem:[#allocation7 + $0x788] sm:$0xff]
    %v316 = vld [vmem:[#allocation7 + $0x790] sm:$0xff]
    %v317 = vld [vmem:[#allocation7 + $0x798] sm:$0xff]
    %v318 = vld [vmem:[#allocation7 + $0x7a0] sm:$0xff]
    %v319 = vld [vmem:[#allocation7 + $0x7a8] sm:$0xff]
    %v320 = vld [vmem:[#allocation7 + $0x7b0] sm:$0xff]
    %v321 = vld [vmem:[#allocation7 + $0x7b8] sm:$0xff]
    %v322 = vld [vmem:[#allocation7 + $0x7c0] sm:$0xff]
    %v323 = vld [vmem:[#allocation7 + $0x7c8] sm:$0xff]
    %v324 = vld [vmem:[#allocation7 + $0x7d0] sm:$0xff]
    %v325 = vld [vmem:[#allocation7 + $0x7d8] sm:$0xff]
    %v326 = vld [vmem:[#allocation7 + $0x7e0] sm:$0xff]
    %v327 = vld [vmem:[#allocation7 + $0x7e8] sm:$0xff]
    %v328 = vld [vmem:[#allocation7 + $0x7f0] sm:$0xff]
    %v329 = vld [vmem:[#allocation7 + $0x7f8] sm:$0xff]
    %v330 = vld [vmem:[#allocation7 + $0x800] sm:$0xff]
    %v331 = vld [vmem:[#allocation7 + $0x808] sm:$0xff]
    %v332 = vld [vmem:[#allocation7 + $0x810] sm:$0xff]
    %v333 = vld [vmem:[#allocation7 + $0x818] sm:$0xff]
    %v334 = vld [vmem:[#allocation7 + $0x820] sm:$0xff]
    %v335 = vld [vmem:[#allocation7 + $0x828] sm:$0xff]
    %v336 = vld [vmem:[#allocation7 + $0x830] sm:$0xff]
    %v337 = vld [vmem:[#allocation7 + $0x838] sm:$0xff]
    %v338 = vld [vmem:[#allocation7 + $0x840] sm:$0xff]
    %v339 = vld [vmem:[#allocation7 + $0x848] sm:$0xff]
    %v340 = vld [vmem:[#allocation7 + $0x850] sm:$0xff]
    %v341 = vld [vmem:[#allocation7 + $0x858] sm:$0xff]
    %v342 = vld [vmem:[#allocation7 + $0x860] sm:$0xff]
    %v343 = vld [vmem:[#allocation7 + $0x868] sm:$0xff]
    %v344 = vld [vmem:[#allocation7 + $0x870] sm:$0xff]
    %v345 = vld [vmem:[#allocation7 + $0x878] sm:$0xff]
    %v346 = vld [vmem:[#allocation7 + $0x880] sm:$0xff]
    %v347 = vld [vmem:[#allocation7 + $0x888] sm:$0xff]
    %v348 = vld [vmem:[#allocation7 + $0x890] sm:$0xff]
    %v349 = vld [vmem:[#allocation7 + $0x898] sm:$0xff]
    %v350 = vld [vmem:[#allocation7 + $0x8a0] sm:$0xff]
    %v351 = vld [vmem:[#allocation7 + $0x8a8] sm:$0xff]
    %v352 = vld [vmem:[#allocation7 + $0x8b0] sm:$0xff]
    %v353 = vld [vmem:[#allocation7 + $0x8b8] sm:$0xff]
    %v354 = vld [vmem:[#allocation7 + $0x8c0] sm:$0xff]
    %v355 = vld [vmem:[#allocation7 + $0x8c8] sm:$0xff]
    %v356 = vld [vmem:[#allocation7 + $0x8d0] sm:$0xff]
    %v357 = vld [vmem:[#allocation7 + $0x8d8] sm:$0xff]
    %v358 = vld [vmem:[#allocation7 + $0x8e0] sm:$0xff]
    %v359 = vld [vmem:[#allocation7 + $0x8e8] sm:$0xff]
    %v360 = vld [vmem:[#allocation7 + $0x8f0] sm:$0xff]
    %v361 = vld [vmem:[#allocation7 + $0x8f8] sm:$0xff]
    %v362 = vld [vmem:[#allocation7 + $0x900] sm:$0xff]
    %v363 = vld [vmem:[#allocation7 + $0x908] sm:$0xff]
    %v364 = vld [vmem:[#allocation7 + $0x910] sm:$0xff]
    %v365 = vld [vmem:[#allocation7 + $0x918] sm:$0xff]
    %v366 = vld [vmem:[#allocation7 + $0x920] sm:$0xff]
    %v367 = vld [vmem:[#allocation7 + $0x928] sm:$0xff]
    %v368 = vld [vmem:[#allocation7 + $0x930] sm:$0xff]
    %v369 = vld [vmem:[#allocation7 + $0x938] sm:$0xff]
    %v370 = vld [vmem:[#allocation7 + $0x940] sm:$0xff]
    %v371 = vld [vmem:[#allocation7 + $0x948] sm:$0xff]
    %v372 = vld [vmem:[#allocation7 + $0x950] sm:$0xff]
    %v373 = vld [vmem:[#allocation7 + $0x958] sm:$0xff]
    %v374 = vld [vmem:[#allocation7 + $0x960] sm:$0xff]
    %v375 = vld [vmem:[#allocation7 + $0x968] sm:$0xff]
    %v376 = vld [vmem:[#allocation7 + $0x970] sm:$0xff]
    %v377 = vld [vmem:[#allocation7 + $0x978] sm:$0xff]
    %v378 = vld [vmem:[#allocation7 + $0x980] sm:$0xff]
    %v379 = vld [vmem:[#allocation7 + $0x988] sm:$0xff]
    %v380 = vld [vmem:[#allocation7 + $0x990] sm:$0xff]
    %v381 = vld [vmem:[#allocation7 + $0x998] sm:$0xff]
    %v382 = vld [vmem:[#allocation7 + $0x9a0] sm:$0xff]
    %v383 = vld [vmem:[#allocation7 + $0x9a8] sm:$0xff]
    %v384 = vld [vmem:[#allocation7 + $0x9b0] sm:$0xff]
    %v385 = vld [vmem:[#allocation7 + $0x9b8] sm:$0xff]
    %v386 = vld [vmem:[#allocation7 + $0x9c0] sm:$0xff]
    %v387 = vld [vmem:[#allocation7 + $0x9c8] sm:$0xff]
    %v388 = vld [vmem:[#allocation7 + $0x9d0] sm:$0xff]
    %v389 = vld [vmem:[#allocation7 + $0x9d8] sm:$0xff]
    %v390 = vld [vmem:[#allocation7 + $0x9e0] sm:$0xff]
    %v391 = vld [vmem:[#allocation7 + $0x9e8] sm:$0xff]
    %v392 = vld [vmem:[#allocation7 + $0x9f0] sm:$0xff]
    %v393 = vld [vmem:[#allocation7 + $0x9f8] sm:$0xff]
    %v394 = vld [vmem:[#allocation7 + $0xa00] sm:$0xff]
    %v395 = vld [vmem:[#allocation7 + $0xa08] sm:$0xff]
    %v396 = vld [vmem:[#allocation7 + $0xa10] sm:$0xff]
    %v397 = vld [vmem:[#allocation7 + $0xa18] sm:$0xff]
    %v398 = vld [vmem:[#allocation7 + $0xa20] sm:$0xff]
    %v399 = vld [vmem:[#allocation7 + $0xa28] sm:$0xff]
    %v400 = vld [vmem:[#allocation7 + $0xa30] sm:$0xff]
    %v401 = vld [vmem:[#allocation7 + $0xa38] sm:$0xff]
    %v402 = vld [vmem:[#allocation7 + $0xa40] sm:$0xff]
    %v403 = vld [vmem:[#allocation7 + $0xa48] sm:$0xff]
    %v404 = vld [vmem:[#allocation7 + $0xa50] sm:$0xff]
    %v405 = vld [vmem:[#allocation7 + $0xa58] sm:$0xff]
    %v406 = vld [vmem:[#allocation7 + $0xa60] sm:$0xff]
    %v407 = vld [vmem:[#allocation7 + $0xa68] sm:$0xff]
    %v408 = vld [vmem:[#allocation7 + $0xa70] sm:$0xff]
    %v409 = vld [vmem:[#allocation7 + $0xa78] sm:$0xff]
    %v410 = vld [vmem:[#allocation7 + $0xa80] sm:$0xff]
    %v411 = vld [vmem:[#allocation7 + $0xa88] sm:$0xff]
    %v412 = vld [vmem:[#allocation7 + $0xa90] sm:$0xff]
    %v413 = vld [vmem:[#allocation7 + $0xa98] sm:$0xff]
    %v414 = vld [vmem:[#allocation7 + $0xaa0] sm:$0xff]
    %v415 = vld [vmem:[#allocation7 + $0xaa8] sm:$0xff]
    %v416 = vld [vmem:[#allocation7 + $0xab0] sm:$0xff]
    %v417 = vld [vmem:[#allocation7 + $0xab8] sm:$0xff]
    %v418 = vld [vmem:[#allocation7 + $0xac0] sm:$0xff]
    %v419 = vld [vmem:[#allocation7 + $0xac8] sm:$0xff]
    %v420 = vld [vmem:[#allocation7 + $0xad0] sm:$0xff]
    %v421 = vld [vmem:[#allocation7 + $0xad8] sm:$0xff]
    %v422 = vld [vmem:[#allocation7 + $0xae0] sm:$0xff]
    %v423 = vld [vmem:[#allocation7 + $0xae8] sm:$0xff]
    %v424 = vld [vmem:[#allocation7 + $0xaf0] sm:$0xff]
    %v425 = vld [vmem:[#allocation7 + $0xaf8] sm:$0xff]
    %v426 = vld [vmem:[#allocation7 + $0xb00] sm:$0xff]
    %v427 = vld [vmem:[#allocation7 + $0xb08] sm:$0xff]
    %v428 = vld [vmem:[#allocation7 + $0xb10] sm:$0xff]
    %v429 = vld [vmem:[#allocation7 + $0xb18] sm:$0xff]
    %v430 = vld [vmem:[#allocation7 + $0xb20] sm:$0xff]
    %v431 = vld [vmem:[#allocation7 + $0xb28] sm:$0xff]
    %v432 = vld [vmem:[#allocation7 + $0xb30] sm:$0xff]
    %v433 = vld [vmem:[#allocation7 + $0xb38] sm:$0xff]
    %v434 = vld [vmem:[#allocation7 + $0xb40] sm:$0xff]
    %v435 = vld [vmem:[#allocation7 + $0xb48] sm:$0xff]
    %v436 = vld [vmem:[#allocation7 + $0xb50] sm:$0xff]
    %v437 = vld [vmem:[#allocation7 + $0xb58] sm:$0xff]
    %v438 = vld [vmem:[#allocation7 + $0xb60] sm:$0xff]
    %v439 = vld [vmem:[#allocation7 + $0xb68] sm:$0xff]
    %v440 = vld [vmem:[#allocation7 + $0xb70] sm:$0xff]
    %v441 = vld [vmem:[#allocation7 + $0xb78] sm:$0xff]
    %v442 = vld [vmem:[#allocation7 + $0xb80] sm:$0xff]
    %v443 = vld [vmem:[#allocation7 + $0xb88] sm:$0xff]
    %v444 = vld [vmem:[#allocation7 + $0xb90] sm:$0xff]
    %v445 = vld [vmem:[#allocation7 + $0xb98] sm:$0xff]
    %v446 = vld [vmem:[#allocation7 + $0xba0] sm:$0xff]
    %v447 = vld [vmem:[#allocation7 + $0xba8] sm:$0xff]
    %v448 = vld [vmem:[#allocation7 + $0xbb0] sm:$0xff]
    %v449 = vld [vmem:[#allocation7 + $0xbb8] sm:$0xff]
    %v450 = vld [vmem:[#allocation7 + $0xbc0] sm:$0xff]
    %v451 = vld [vmem:[#allocation7 + $0xbc8] sm:$0xff]
    %v452 = vld [vmem:[#allocation7 + $0xbd0] sm:$0xff]
    %v453 = vld [vmem:[#allocation7 + $0xbd8] sm:$0xff]
    %v454 = vld [vmem:[#allocation7 + $0xbe0] sm:$0xff]
    %v455 = vld [vmem:[#allocation7 + $0xbe8] sm:$0xff]
    %v456 = vld [vmem:[#allocation7 + $0xbf0] sm:$0xff]
    %v457 = vld [vmem:[#allocation7 + $0xbf8] sm:$0xff]
    %v458 = vld [vmem:[#allocation7 + $0xc00] sm:$0xff]
    %v459 = vld [vmem:[#allocation7 + $0xc08] sm:$0xff]
    %v460 = vld [vmem:[#allocation7 + $0xc10] sm:$0xff]
    %v461 = vld [vmem:[#allocation7 + $0xc18] sm:$0xff]
    %v462 = vld [vmem:[#allocation7 + $0xc20] sm:$0xff]
    %v463 = vld [vmem:[#allocation7 + $0xc28] sm:$0xff]
    %v464 = vld [vmem:[#allocation7 + $0xc30] sm:$0xff]
    %v465 = vld [vmem:[#allocation7 + $0xc38] sm:$0xff]
    %v466 = vld [vmem:[#allocation7 + $0xc40] sm:$0xff]
    %v467 = vld [vmem:[#allocation7 + $0xc48] sm:$0xff]
    %v468 = vld [vmem:[#allocation7 + $0xc50] sm:$0xff]
    %v469 = vld [vmem:[#allocation7 + $0xc58] sm:$0xff]
    %v470 = vld [vmem:[#allocation7 + $0xc60] sm:$0xff]
    %v471 = vld [vmem:[#allocation7 + $0xc68] sm:$0xff]
    %v472 = vld [vmem:[#allocation7 + $0xc70] sm:$0xff]
    %v473 = vld [vmem:[#allocation7 + $0xc78] sm:$0xff]
    %v474 = vld [vmem:[#allocation7 + $0xc80] sm:$0xff]
    %v475 = vld [vmem:[#allocation7 + $0xc88] sm:$0xff]
    %v476 = vld [vmem:[#allocation7 + $0xc90] sm:$0xff]
    %v477 = vld [vmem:[#allocation7 + $0xc98] sm:$0xff]
    %v478 = vld [vmem:[#allocation7 + $0xca0] sm:$0xff]
    %v479 = vld [vmem:[#allocation7 + $0xca8] sm:$0xff]
    %v480 = vld [vmem:[#allocation7 + $0xcb0] sm:$0xff]
    %v481 = vld [vmem:[#allocation7 + $0xcb8] sm:$0xff]
    %v482 = vld [vmem:[#allocation7 + $0xcc0] sm:$0xff]
    %v483 = vld [vmem:[#allocation7 + $0xcc8] sm:$0xff]
    %v484 = vld [vmem:[#allocation7 + $0xcd0] sm:$0xff]
    %v485 = vld [vmem:[#allocation7 + $0xcd8] sm:$0xff]
    %v486 = vld [vmem:[#allocation7 + $0xce0] sm:$0xff]
    %v487 = vld [vmem:[#allocation7 + $0xce8] sm:$0xff]
    %v488 = vld [vmem:[#allocation7 + $0xcf0] sm:$0xff]
    %v489 = vld [vmem:[#allocation7 + $0xcf8] sm:$0xff]
    %v490 = vld [vmem:[#allocation7 + $0xd00] sm:$0xff]
    %v491 = vld [vmem:[#allocation7 + $0xd08] sm:$0xff]
    %v492 = vld [vmem:[#allocation7 + $0xd10] sm:$0xff]
    %v493 = vld [vmem:[#allocation7 + $0xd18] sm:$0xff]
    %v494 = vld [vmem:[#allocation7 + $0xd20] sm:$0xff]
    %v495 = vld [vmem:[#allocation7 + $0xd28] sm:$0xff]
    %v496 = vld [vmem:[#allocation7 + $0xd30] sm:$0xff]
    %v497 = vld [vmem:[#allocation7 + $0xd38] sm:$0xff]
    %v498 = vld [vmem:[#allocation7 + $0xd40] sm:$0xff]
    %v499 = vld [vmem:[#allocation7 + $0xd48] sm:$0xff]
    %v500 = vld [vmem:[#allocation7 + $0xd50] sm:$0xff]
    %v501 = vld [vmem:[#allocation7 + $0xd58] sm:$0xff]
    %v502 = vld [vmem:[#allocation7 + $0xd60] sm:$0xff]
    %v503 = vld [vmem:[#allocation7 + $0xd68] sm:$0xff]
    %v504 = vld [vmem:[#allocation7 + $0xd70] sm:$0xff]
    %v505 = vld [vmem:[#allocation7 + $0xd78] sm:$0xff]
    %v506 = vld [vmem:[#allocation7 + $0xd80] sm:$0xff]
    %v507 = vld [vmem:[#allocation7 + $0xd88] sm:$0xff]
    %v508 = vld [vmem:[#allocation7 + $0xd90] sm:$0xff]
    %v509 = vld [vmem:[#allocation7 + $0xd98] sm:$0xff]
    %v510 = vld [vmem:[#allocation7 + $0xda0] sm:$0xff]
    %v511 = vld [vmem:[#allocation7 + $0xda8] sm:$0xff]
    %v512 = vld [vmem:[#allocation7 + $0xdb0] sm:$0xff]
    %v513 = vld [vmem:[#allocation7 + $0xdb8] sm:$0xff]
    %v514 = vld [vmem:[#allocation7 + $0xdc0] sm:$0xff]
    %v515 = vld [vmem:[#allocation7 + $0xdc8] sm:$0xff]
    %v516 = vld [vmem:[#allocation7 + $0xdd0] sm:$0xff]
    %v517 = vld [vmem:[#allocation7 + $0xdd8] sm:$0xff]
    %v518 = vld [vmem:[#allocation7 + $0xde0] sm:$0xff]
    %v519 = vld [vmem:[#allocation7 + $0xde8] sm:$0xff]
    %v520 = vld [vmem:[#allocation7 + $0xdf0] sm:$0xff]
    %v521 = vld [vmem:[#allocation7 + $0xdf8] sm:$0xff]
    %v522 = vld [vmem:[#allocation7 + $0xe00] sm:$0xff]
    %v523 = vld [vmem:[#allocation7 + $0xe08] sm:$0xff]
    %v524 = vld [vmem:[#allocation7 + $0xe10] sm:$0xff]
    %v525 = vld [vmem:[#allocation7 + $0xe18] sm:$0xff]
    %v526 = vld [vmem:[#allocation7 + $0xe20] sm:$0xff]
    %v527 = vld [vmem:[#allocation7 + $0xe28] sm:$0xff]
    %v528 = vld [vmem:[#allocation7 + $0xe30] sm:$0xff]
    %v529 = vld [vmem:[#allocation7 + $0xe38] sm:$0xff]
    %v530 = vld [vmem:[#allocation7 + $0xe40] sm:$0xff]
    %v531 = vld [vmem:[#allocation7 + $0xe48] sm:$0xff]
    %v532 = vld [vmem:[#allocation7 + $0xe50] sm:$0xff]
    %v533 = vld [vmem:[#allocation7 + $0xe58] sm:$0xff]
    %v534 = vld [vmem:[#allocation7 + $0xe60] sm:$0xff]
    %v535 = vld [vmem:[#allocation7 + $0xe68] sm:$0xff]
    %v536 = vld [vmem:[#allocation7 + $0xe70] sm:$0xff]
    %v537 = vld [vmem:[#allocation7 + $0xe78] sm:$0xff]
    %v538 = vld [vmem:[#allocation7 + $0xe80] sm:$0xff]
    %v539 = vld [vmem:[#allocation7 + $0xe88] sm:$0xff]
    %v540 = vld [vmem:[#allocation7 + $0xe90] sm:$0xff]
    %v541 = vld [vmem:[#allocation7 + $0xe98] sm:$0xff]
    %v542 = vld [vmem:[#allocation7 + $0xea0] sm:$0xff]
    %v543 = vld [vmem:[#allocation7 + $0xea8] sm:$0xff]
    %v544 = vld [vmem:[#allocation7 + $0xeb0] sm:$0xff]
    %v545 = vld [vmem:[#allocation7 + $0xeb8] sm:$0xff]
    %v546 = vld [vmem:[#allocation7 + $0xec0] sm:$0xff]
    %v547 = vld [vmem:[#allocation7 + $0xec8] sm:$0xff]
    %v548 = vld [vmem:[#allocation7 + $0xed0] sm:$0xff]
    %v549 = vld [vmem:[#allocation7 + $0xed8] sm:$0xff]
    %v550 = vld [vmem:[#allocation7 + $0xee0] sm:$0xff]
    %v551 = vld [vmem:[#allocation7 + $0xee8] sm:$0xff]
    %v552 = vld [vmem:[#allocation7 + $0xef0] sm:$0xff]
    %v553 = vld [vmem:[#allocation7 + $0xef8] sm:$0xff]
    %v554 = vld [vmem:[#allocation7 + $0xf00] sm:$0xff]
    %v555 = vld [vmem:[#allocation7 + $0xf08] sm:$0xff]
    %v556 = vld [vmem:[#allocation7 + $0xf10] sm:$0xff]
    %v557 = vld [vmem:[#allocation7 + $0xf18] sm:$0xff]
    %v558 = vld [vmem:[#allocation7 + $0xf20] sm:$0xff]
    %v559 = vld [vmem:[#allocation7 + $0xf28] sm:$0xff]
    %v560 = vld [vmem:[#allocation7 + $0xf30] sm:$0xff]
    %v561 = vld [vmem:[#allocation7 + $0xf38] sm:$0xff]
    %v562 = vld [vmem:[#allocation7 + $0xf40] sm:$0xff]
    %v563 = vld [vmem:[#allocation7 + $0xf48] sm:$0xff]
    %v564 = vld [vmem:[#allocation7 + $0xf50] sm:$0xff]
    %v565 = vld [vmem:[#allocation7 + $0xf58] sm:$0xff]
    %v566 = vld [vmem:[#allocation7 + $0xf60] sm:$0xff]
    %v567 = vld [vmem:[#allocation7 + $0xf68] sm:$0xff]
    %v568 = vld [vmem:[#allocation7 + $0xf70] sm:$0xff]
    %v569 = vld [vmem:[#allocation7 + $0xf78] sm:$0xff]
    %v570 = vld [vmem:[#allocation7 + $0xf80] sm:$0xff]
    %v571 = vld [vmem:[#allocation7 + $0xf88] sm:$0xff]
    %v572 = vld [vmem:[#allocation7 + $0xf90] sm:$0xff]
    %v573 = vld [vmem:[#allocation7 + $0xf98] sm:$0xff]
    %v574 = vld [vmem:[#allocation7 + $0xfa0] sm:$0xff]
    %v575 = vld [vmem:[#allocation7 + $0xfa8] sm:$0xff]
    %v576 = vld [vmem:[#allocation7 + $0xfb0] sm:$0xff]
    %v577 = vld [vmem:[#allocation7 + $0xfb8] sm:$0xff]
    %v578 = vld [vmem:[#allocation7 + $0xfc0] sm:$0xff]
    %v579 = vld [vmem:[#allocation7 + $0xfc8] sm:$0xff]
    %v580 = vld [vmem:[#allocation7 + $0xfd0] sm:$0xff]
    %v581 = vld [vmem:[#allocation7 + $0xfd8] sm:$0xff]
    %v582 = vld [vmem:[#allocation7 + $0xfe0] sm:$0xff]
    %v583 = vld [vmem:[#allocation7 + $0xfe8] sm:$0xff]
    %v584 = vld [vmem:[#allocation7 + $0xff0] sm:$0xff]
    %v585 = vld [vmem:[#allocation7 + $0xff8] sm:$0xff]
    %v586 = vld [vmem:[#allocation2] sm:$0xff]
    %v587 = vld [vmem:[#allocation2 + $0x8] sm:$0xff]
    %vm588 = vcmask 130048
    %v590 = vsel %vm588, %v68, 0
    %v593 = vsel %vm588, %v69, 0
    %595 = vmatpush.msra.mxu0 0.0
    %596 = vmatpush.msra.mxu0 0.0
    %597 = vmatpush.msra.mxu0 0.0
    %598 = vmatpush.msra.mxu0 0.0
    %599 = vmatpush.msra.mxu0 0.0
    %600 = vmatpush.msra.mxu0 0.0
    %601 = vmatpush.msra.mxu0 0.0
    %602 = vmatpush.msra.mxu0 0.0
    %603 = vmatpush.msra.mxu0 0.0
    %604 = vmatpush.msra.mxu0 0.0
    %605 = vmatpush.msra.mxu0 0.0
    %606 = vmatpush.msra.mxu0 0.0
    %607 = vmatpush.msra.mxu0 0.0
    %608 = vmatpush.msra.mxu0 0.0
    %609 = vmatpush.msra.mxu0 %v587
    %610 = vmatpush.msra.mxu0 %v586
    %611 = vmatmul.f32.gmra.mxu0 %v590
    %v612 = vpop.f32.mrf.mxu0
    %v613 = vadd.f32 0.0, %v612
    %614 = vmatmul.f32.gmra.mxu0 %v593
    %v615 = vpop.f32.mrf.mxu0
    %v616 = vadd.f32 0.0, %v615
    %617 = vdwg.mxu0
    %v620 = vrot.slane %v613, 1
    %v621 = vrot.slane %v613, 2
    %v622 = vrot.slane %v613, 3
    %v623 = vrot.slane %v613, 4
    %v624 = vrot.slane %v613, 5
    %v625 = vrot.slane %v613, 6
    %v626 = vrot.slane %v613, 7
    %v627 = vrot.slane %v616, 1
    %v628 = vrot.slane %v616, 2
    %v629 = vrot.slane %v616, 3
    %v630 = vrot.slane %v616, 4
    %v631 = vrot.slane %v616, 5
    %v632 = vrot.slane %v616, 6
    %v633 = vrot.slane %v616, 7
    %648 = vmatpush.msra.mxu0 %v104
    %649 = vmatpush.msra.mxu0 %v102
    %650 = vmatpush.msra.mxu0 %v100
    %651 = vmatpush.msra.mxu0 %v98
    %652 = vmatpush.msra.mxu0 %v96
    %653 = vmatpush.msra.mxu0 %v94
    %654 = vmatpush.msra.mxu0 %v92
    %655 = vmatpush.msra.mxu0 %v90
    %656 = vmatpush.msra.mxu0 %v88
    %657 = vmatpush.msra.mxu0 %v86
    %658 = vmatpush.msra.mxu0 %v84
    %659 = vmatpush.msra.mxu0 %v82
    %660 = vmatpush.msra.mxu0 %v80
    %661 = vmatpush.msra.mxu0 %v78
    %662 = vmatpush.msra.mxu0 %v76
    %663 = vmatpush.msra.mxu0 %v74
    %664 = vmatmul.f32.gmra.mxu0 %v613
    %v665 = vpop.f32.mrf.mxu0
    %v666 = vadd.f32 0.0, %v665
    %667 = vdwg.mxu0
    %668 = vmatpush.msra.mxu0 %v105
    %669 = vmatpush.msra.mxu0 %v103
    %670 = vmatpush.msra.mxu0 %v101
    %671 = vmatpush.msra.mxu0 %v99
    %672 = vmatpush.msra.mxu0 %v97
    %673 = vmatpush.msra.mxu0 %v95
    %674 = vmatpush.msra.mxu0 %v93
    %675 = vmatpush.msra.mxu0 %v91
    %676 = vmatpush.msra.mxu0 %v89
    %677 = vmatpush.msra.mxu0 %v87
    %678 = vmatpush.msra.mxu0 %v85
    %679 = vmatpush.msra.mxu0 %v83
    %680 = vmatpush.msra.mxu0 %v81
    %681 = vmatpush.msra.mxu0 %v79
    %682 = vmatpush.msra.mxu0 %v77
    %683 = vmatpush.msra.mxu0 %v75
    %684 = vmatmul.f32.gmra.mxu0 %v613
    %v685 = vpop.f32.mrf.mxu0
    %v686 = vadd.f32 0.0, %v685
    %687 = vdwg.mxu0
    %688 = vmatpush.msra.mxu0 %v136
    %689 = vmatpush.msra.mxu0 %v134
    %690 = vmatpush.msra.mxu0 %v132
    %691 = vmatpush.msra.mxu0 %v130
    %692 = vmatpush.msra.mxu0 %v128
    %693 = vmatpush.msra.mxu0 %v126
    %694 = vmatpush.msra.mxu0 %v124
    %695 = vmatpush.msra.mxu0 %v122
    %696 = vmatpush.msra.mxu0 %v120
    %697 = vmatpush.msra.mxu0 %v118
    %698 = vmatpush.msra.mxu0 %v116
    %699 = vmatpush.msra.mxu0 %v114
    %700 = vmatpush.msra.mxu0 %v112
    %701 = vmatpush.msra.mxu0 %v110
    %702 = vmatpush.msra.mxu0 %v108
    %703 = vmatpush.msra.mxu0 %v106
    %704 = vmatmul.f32.gmra.mxu0 %v620
    %v705 = vpop.f32.mrf.mxu0
    %v706 = vadd.f32 0.0, %v705
    %707 = vdwg.mxu0
    %708 = vmatpush.msra.mxu0 %v137
    %709 = vmatpush.msra.mxu0 %v135
    %710 = vmatpush.msra.mxu0 %v133
    %711 = vmatpush.msra.mxu0 %v131
    %712 = vmatpush.msra.mxu0 %v129
    %713 = vmatpush.msra.mxu0 %v127
    %714 = vmatpush.msra.mxu0 %v125
    %715 = vmatpush.msra.mxu0 %v123
    %716 = vmatpush.msra.mxu0 %v121
    %717 = vmatpush.msra.mxu0 %v119
    %718 = vmatpush.msra.mxu0 %v117
    %719 = vmatpush.msra.mxu0 %v115
    %720 = vmatpush.msra.mxu0 %v113
    %721 = vmatpush.msra.mxu0 %v111
    %722 = vmatpush.msra.mxu0 %v109
    %723 = vmatpush.msra.mxu0 %v107
    %724 = vmatmul.f32.gmra.mxu0 %v620
    %v725 = vpop.f32.mrf.mxu0
    %v726 = vadd.f32 0.0, %v725
    %727 = vdwg.mxu0
    %728 = vmatpush.msra.mxu0 %v168
    %729 = vmatpush.msra.mxu0 %v166
    %730 = vmatpush.msra.mxu0 %v164
    %731 = vmatpush.msra.mxu0 %v162
    %732 = vmatpush.msra.mxu0 %v160
    %733 = vmatpush.msra.mxu0 %v158
    %734 = vmatpush.msra.mxu0 %v156
    %735 = vmatpush.msra.mxu0 %v154
    %736 = vmatpush.msra.mxu0 %v152
    %737 = vmatpush.msra.mxu0 %v150
    %738 = vmatpush.msra.mxu0 %v148
    %739 = vmatpush.msra.mxu0 %v146
    %740 = vmatpush.msra.mxu0 %v144
    %741 = vmatpush.msra.mxu0 %v142
    %742 = vmatpush.msra.mxu0 %v140
    %743 = vmatpush.msra.mxu0 %v138
    %744 = vmatmul.f32.gmra.mxu0 %v621
    %v745 = vpop.f32.mrf.mxu0
    %v746 = vadd.f32 0.0, %v745
    %747 = vdwg.mxu0
    %748 = vmatpush.msra.mxu0 %v169
    %749 = vmatpush.msra.mxu0 %v167
    %750 = vmatpush.msra.mxu0 %v165
    %751 = vmatpush.msra.mxu0 %v163
    %752 = vmatpush.msra.mxu0 %v161
    %753 = vmatpush.msra.mxu0 %v159
    %754 = vmatpush.msra.mxu0 %v157
    %755 = vmatpush.msra.mxu0 %v155
    %756 = vmatpush.msra.mxu0 %v153
    %757 = vmatpush.msra.mxu0 %v151
    %758 = vmatpush.msra.mxu0 %v149
    %759 = vmatpush.msra.mxu0 %v147
    %760 = vmatpush.msra.mxu0 %v145
    %761 = vmatpush.msra.mxu0 %v143
    %762 = vmatpush.msra.mxu0 %v141
    %763 = vmatpush.msra.mxu0 %v139
    %764 = vmatmul.f32.gmra.mxu0 %v621
    %v765 = vpop.f32.mrf.mxu0
    %v766 = vadd.f32 0.0, %v765
    %767 = vdwg.mxu0
    %768 = vmatpush.msra.mxu0 %v200
    %769 = vmatpush.msra.mxu0 %v198
    %770 = vmatpush.msra.mxu0 %v196
    %771 = vmatpush.msra.mxu0 %v194
    %772 = vmatpush.msra.mxu0 %v192
    %773 = vmatpush.msra.mxu0 %v190
    %774 = vmatpush.msra.mxu0 %v188
    %775 = vmatpush.msra.mxu0 %v186
    %776 = vmatpush.msra.mxu0 %v184
    %777 = vmatpush.msra.mxu0 %v182
    %778 = vmatpush.msra.mxu0 %v180
    %779 = vmatpush.msra.mxu0 %v178
    %780 = vmatpush.msra.mxu0 %v176
    %781 = vmatpush.msra.mxu0 %v174
    %782 = vmatpush.msra.mxu0 %v172
    %783 = vmatpush.msra.mxu0 %v170
    %784 = vmatmul.f32.gmra.mxu0 %v622
    %v785 = vpop.f32.mrf.mxu0
    %v786 = vadd.f32 0.0, %v785
    %787 = vdwg.mxu0
    %788 = vmatpush.msra.mxu0 %v201
    %789 = vmatpush.msra.mxu0 %v199
    %790 = vmatpush.msra.mxu0 %v197
    %791 = vmatpush.msra.mxu0 %v195
    %792 = vmatpush.msra.mxu0 %v193
    %793 = vmatpush.msra.mxu0 %v191
    %794 = vmatpush.msra.mxu0 %v189
    %795 = vmatpush.msra.mxu0 %v187
    %796 = vmatpush.msra.mxu0 %v185
    %797 = vmatpush.msra.mxu0 %v183
    %798 = vmatpush.msra.mxu0 %v181
    %799 = vmatpush.msra.mxu0 %v179
    %800 = vmatpush.msra.mxu0 %v177
    %801 = vmatpush.msra.mxu0 %v175
    %802 = vmatpush.msra.mxu0 %v173
    %803 = vmatpush.msra.mxu0 %v171
    %804 = vmatmul.f32.gmra.mxu0 %v622
    %v805 = vpop.f32.mrf.mxu0
    %v806 = vadd.f32 0.0, %v805
    %807 = vdwg.mxu0
    %808 = vmatpush.msra.mxu0 %v232
    %809 = vmatpush.msra.mxu0 %v230
    %810 = vmatpush.msra.mxu0 %v228
    %811 = vmatpush.msra.mxu0 %v226
    %812 = vmatpush.msra.mxu0 %v224
    %813 = vmatpush.msra.mxu0 %v222
    %814 = vmatpush.msra.mxu0 %v220
    %815 = vmatpush.msra.mxu0 %v218
    %816 = vmatpush.msra.mxu0 %v216
    %817 = vmatpush.msra.mxu0 %v214
    %818 = vmatpush.msra.mxu0 %v212
    %819 = vmatpush.msra.mxu0 %v210
    %820 = vmatpush.msra.mxu0 %v208
    %821 = vmatpush.msra.mxu0 %v206
    %822 = vmatpush.msra.mxu0 %v204
    %823 = vmatpush.msra.mxu0 %v202
    %824 = vmatmul.f32.gmra.mxu0 %v623
    %v825 = vpop.f32.mrf.mxu0
    %v826 = vadd.f32 0.0, %v825
    %827 = vdwg.mxu0
    %828 = vmatpush.msra.mxu0 %v233
    %829 = vmatpush.msra.mxu0 %v231
    %830 = vmatpush.msra.mxu0 %v229
    %831 = vmatpush.msra.mxu0 %v227
    %832 = vmatpush.msra.mxu0 %v225
    %833 = vmatpush.msra.mxu0 %v223
    %834 = vmatpush.msra.mxu0 %v221
    %835 = vmatpush.msra.mxu0 %v219
    %836 = vmatpush.msra.mxu0 %v217
    %837 = vmatpush.msra.mxu0 %v215
    %838 = vmatpush.msra.mxu0 %v213
    %839 = vmatpush.msra.mxu0 %v211
    %840 = vmatpush.msra.mxu0 %v209
    %841 = vmatpush.msra.mxu0 %v207
    %842 = vmatpush.msra.mxu0 %v205
    %843 = vmatpush.msra.mxu0 %v203
    %844 = vmatmul.f32.gmra.mxu0 %v623
    %v845 = vpop.f32.mrf.mxu0
    %v846 = vadd.f32 0.0, %v845
    %847 = vdwg.mxu0
    %848 = vmatpush.msra.mxu0 %v264
    %849 = vmatpush.msra.mxu0 %v262
    %850 = vmatpush.msra.mxu0 %v260
    %851 = vmatpush.msra.mxu0 %v258
    %852 = vmatpush.msra.mxu0 %v256
    %853 = vmatpush.msra.mxu0 %v254
    %854 = vmatpush.msra.mxu0 %v252
    %855 = vmatpush.msra.mxu0 %v250
    %856 = vmatpush.msra.mxu0 %v248
    %857 = vmatpush.msra.mxu0 %v246
    %858 = vmatpush.msra.mxu0 %v244
    %859 = vmatpush.msra.mxu0 %v242
    %860 = vmatpush.msra.mxu0 %v240
    %861 = vmatpush.msra.mxu0 %v238
    %862 = vmatpush.msra.mxu0 %v236
    %863 = vmatpush.msra.mxu0 %v234
    %864 = vmatmul.f32.gmra.mxu0 %v624
    %v865 = vpop.f32.mrf.mxu0
    %v866 = vadd.f32 0.0, %v865
    %867 = vdwg.mxu0
    %868 = vmatpush.msra.mxu0 %v265
    %869 = vmatpush.msra.mxu0 %v263
    %870 = vmatpush.msra.mxu0 %v261
    %871 = vmatpush.msra.mxu0 %v259
    %872 = vmatpush.msra.mxu0 %v257
    %873 = vmatpush.msra.mxu0 %v255
    %874 = vmatpush.msra.mxu0 %v253
    %875 = vmatpush.msra.mxu0 %v251
    %876 = vmatpush.msra.mxu0 %v249
    %877 = vmatpush.msra.mxu0 %v247
    %878 = vmatpush.msra.mxu0 %v245
    %879 = vmatpush.msra.mxu0 %v243
    %880 = vmatpush.msra.mxu0 %v241
    %881 = vmatpush.msra.mxu0 %v239
    %882 = vmatpush.msra.mxu0 %v237
    %883 = vmatpush.msra.mxu0 %v235
    %884 = vmatmul.f32.gmra.mxu0 %v624
    %v885 = vpop.f32.mrf.mxu0
    %v886 = vadd.f32 0.0, %v885
    %887 = vdwg.mxu0
    %888 = vmatpush.msra.mxu0 %v296
    %889 = vmatpush.msra.mxu0 %v294
    %890 = vmatpush.msra.mxu0 %v292
    %891 = vmatpush.msra.mxu0 %v290
    %892 = vmatpush.msra.mxu0 %v288
    %893 = vmatpush.msra.mxu0 %v286
    %894 = vmatpush.msra.mxu0 %v284
    %895 = vmatpush.msra.mxu0 %v282
    %896 = vmatpush.msra.mxu0 %v280
    %897 = vmatpush.msra.mxu0 %v278
    %898 = vmatpush.msra.mxu0 %v276
    %899 = vmatpush.msra.mxu0 %v274
    %900 = vmatpush.msra.mxu0 %v272
    %901 = vmatpush.msra.mxu0 %v270
    %902 = vmatpush.msra.mxu0 %v268
    %903 = vmatpush.msra.mxu0 %v266
    %904 = vmatmul.f32.gmra.mxu0 %v625
    %v905 = vpop.f32.mrf.mxu0
    %v906 = vadd.f32 0.0, %v905
    %907 = vdwg.mxu0
    %908 = vmatpush.msra.mxu0 %v297
    %909 = vmatpush.msra.mxu0 %v295
    %910 = vmatpush.msra.mxu0 %v293
    %911 = vmatpush.msra.mxu0 %v291
    %912 = vmatpush.msra.mxu0 %v289
    %913 = vmatpush.msra.mxu0 %v287
    %914 = vmatpush.msra.mxu0 %v285
    %915 = vmatpush.msra.mxu0 %v283
    %916 = vmatpush.msra.mxu0 %v281
    %917 = vmatpush.msra.mxu0 %v279
    %918 = vmatpush.msra.mxu0 %v277
    %919 = vmatpush.msra.mxu0 %v275
    %920 = vmatpush.msra.mxu0 %v273
    %921 = vmatpush.msra.mxu0 %v271
    %922 = vmatpush.msra.mxu0 %v269
    %923 = vmatpush.msra.mxu0 %v267
    %924 = vmatmul.f32.gmra.mxu0 %v625
    %v925 = vpop.f32.mrf.mxu0
    %v926 = vadd.f32 0.0, %v925
    %927 = vdwg.mxu0
    %928 = vmatpush.msra.mxu0 %v328
    %929 = vmatpush.msra.mxu0 %v326
    %930 = vmatpush.msra.mxu0 %v324
    %931 = vmatpush.msra.mxu0 %v322
    %932 = vmatpush.msra.mxu0 %v320
    %933 = vmatpush.msra.mxu0 %v318
    %934 = vmatpush.msra.mxu0 %v316
    %935 = vmatpush.msra.mxu0 %v314
    %936 = vmatpush.msra.mxu0 %v312
    %937 = vmatpush.msra.mxu0 %v310
    %938 = vmatpush.msra.mxu0 %v308
    %939 = vmatpush.msra.mxu0 %v306
    %940 = vmatpush.msra.mxu0 %v304
    %941 = vmatpush.msra.mxu0 %v302
    %942 = vmatpush.msra.mxu0 %v300
    %943 = vmatpush.msra.mxu0 %v298
    %944 = vmatmul.f32.gmra.mxu0 %v626
    %v945 = vpop.f32.mrf.mxu0
    %v946 = vadd.f32 0.0, %v945
    %947 = vdwg.mxu0
    %948 = vmatpush.msra.mxu0 %v329
    %949 = vmatpush.msra.mxu0 %v327
    %950 = vmatpush.msra.mxu0 %v325
    %951 = vmatpush.msra.mxu0 %v323
    %952 = vmatpush.msra.mxu0 %v321
    %953 = vmatpush.msra.mxu0 %v319
    %954 = vmatpush.msra.mxu0 %v317
    %955 = vmatpush.msra.mxu0 %v315
    %956 = vmatpush.msra.mxu0 %v313
    %957 = vmatpush.msra.mxu0 %v311
    %958 = vmatpush.msra.mxu0 %v309
    %959 = vmatpush.msra.mxu0 %v307
    %960 = vmatpush.msra.mxu0 %v305
    %961 = vmatpush.msra.mxu0 %v303
    %962 = vmatpush.msra.mxu0 %v301
    %963 = vmatpush.msra.mxu0 %v299
    %964 = vmatmul.f32.gmra.mxu0 %v626
    %v965 = vpop.f32.mrf.mxu0
    %v966 = vadd.f32 0.0, %v965
    %967 = vdwg.mxu0
    %968 = vmatpush.msra.mxu0 %v360
    %969 = vmatpush.msra.mxu0 %v358
    %970 = vmatpush.msra.mxu0 %v356
    %971 = vmatpush.msra.mxu0 %v354
    %972 = vmatpush.msra.mxu0 %v352
    %973 = vmatpush.msra.mxu0 %v350
    %974 = vmatpush.msra.mxu0 %v348
    %975 = vmatpush.msra.mxu0 %v346
    %976 = vmatpush.msra.mxu0 %v344
    %977 = vmatpush.msra.mxu0 %v342
    %978 = vmatpush.msra.mxu0 %v340
    %979 = vmatpush.msra.mxu0 %v338
    %980 = vmatpush.msra.mxu0 %v336
    %981 = vmatpush.msra.mxu0 %v334
    %982 = vmatpush.msra.mxu0 %v332
    %983 = vmatpush.msra.mxu0 %v330
    %984 = vmatmul.f32.gmra.mxu0 %v616
    %v985 = vpop.f32.mrf.mxu0
    %v986 = vadd.f32 0.0, %v985
    %987 = vdwg.mxu0
    %988 = vmatpush.msra.mxu0 %v361
    %989 = vmatpush.msra.mxu0 %v359
    %990 = vmatpush.msra.mxu0 %v357
    %991 = vmatpush.msra.mxu0 %v355
    %992 = vmatpush.msra.mxu0 %v353
    %993 = vmatpush.msra.mxu0 %v351
    %994 = vmatpush.msra.mxu0 %v349
    %995 = vmatpush.msra.mxu0 %v347
    %996 = vmatpush.msra.mxu0 %v345
    %997 = vmatpush.msra.mxu0 %v343
    %998 = vmatpush.msra.mxu0 %v341
    %999 = vmatpush.msra.mxu0 %v339
    %1000 = vmatpush.msra.mxu0 %v337
    %1001 = vmatpush.msra.mxu0 %v335
    %1002 = vmatpush.msra.mxu0 %v333
    %1003 = vmatpush.msra.mxu0 %v331
    %1004 = vmatmul.f32.gmra.mxu0 %v616
    %v1005 = vpop.f32.mrf.mxu0
    %v1006 = vadd.f32 0.0, %v1005
    %1007 = vdwg.mxu0
    %1008 = vmatpush.msra.mxu0 %v392
    %1009 = vmatpush.msra.mxu0 %v390
    %1010 = vmatpush.msra.mxu0 %v388
    %1011 = vmatpush.msra.mxu0 %v386
    %1012 = vmatpush.msra.mxu0 %v384
    %1013 = vmatpush.msra.mxu0 %v382
    %1014 = vmatpush.msra.mxu0 %v380
    %1015 = vmatpush.msra.mxu0 %v378
    %1016 = vmatpush.msra.mxu0 %v376
    %1017 = vmatpush.msra.mxu0 %v374
    %1018 = vmatpush.msra.mxu0 %v372
    %1019 = vmatpush.msra.mxu0 %v370
    %1020 = vmatpush.msra.mxu0 %v368
    %1021 = vmatpush.msra.mxu0 %v366
    %1022 = vmatpush.msra.mxu0 %v364
    %1023 = vmatpush.msra.mxu0 %v362
    %1024 = vmatmul.f32.gmra.mxu0 %v627
    %v1025 = vpop.f32.mrf.mxu0
    %v1026 = vadd.f32 0.0, %v1025
    %1027 = vdwg.mxu0
    %1028 = vmatpush.msra.mxu0 %v393
    %1029 = vmatpush.msra.mxu0 %v391
    %1030 = vmatpush.msra.mxu0 %v389
    %1031 = vmatpush.msra.mxu0 %v387
    %1032 = vmatpush.msra.mxu0 %v385
    %1033 = vmatpush.msra.mxu0 %v383
    %1034 = vmatpush.msra.mxu0 %v381
    %1035 = vmatpush.msra.mxu0 %v379
    %1036 = vmatpush.msra.mxu0 %v377
    %1037 = vmatpush.msra.mxu0 %v375
    %1038 = vmatpush.msra.mxu0 %v373
    %1039 = vmatpush.msra.mxu0 %v371
    %1040 = vmatpush.msra.mxu0 %v369
    %1041 = vmatpush.msra.mxu0 %v367
    %1042 = vmatpush.msra.mxu0 %v365
    %1043 = vmatpush.msra.mxu0 %v363
    %1044 = vmatmul.f32.gmra.mxu0 %v627
    %v1045 = vpop.f32.mrf.mxu0
    %v1046 = vadd.f32 0.0, %v1045
    %1047 = vdwg.mxu0
    %1048 = vmatpush.msra.mxu0 %v424
    %1049 = vmatpush.msra.mxu0 %v422
    %1050 = vmatpush.msra.mxu0 %v420
    %1051 = vmatpush.msra.mxu0 %v418
    %1052 = vmatpush.msra.mxu0 %v416
    %1053 = vmatpush.msra.mxu0 %v414
    %1054 = vmatpush.msra.mxu0 %v412
    %1055 = vmatpush.msra.mxu0 %v410
    %1056 = vmatpush.msra.mxu0 %v408
    %1057 = vmatpush.msra.mxu0 %v406
    %1058 = vmatpush.msra.mxu0 %v404
    %1059 = vmatpush.msra.mxu0 %v402
    %1060 = vmatpush.msra.mxu0 %v400
    %1061 = vmatpush.msra.mxu0 %v398
    %1062 = vmatpush.msra.mxu0 %v396
    %1063 = vmatpush.msra.mxu0 %v394
    %1064 = vmatmul.f32.gmra.mxu0 %v628
    %v1065 = vpop.f32.mrf.mxu0
    %v1066 = vadd.f32 0.0, %v1065
    %1067 = vdwg.mxu0
    %1068 = vmatpush.msra.mxu0 %v425
    %1069 = vmatpush.msra.mxu0 %v423
    %1070 = vmatpush.msra.mxu0 %v421
    %1071 = vmatpush.msra.mxu0 %v419
    %1072 = vmatpush.msra.mxu0 %v417
    %1073 = vmatpush.msra.mxu0 %v415
    %1074 = vmatpush.msra.mxu0 %v413
    %1075 = vmatpush.msra.mxu0 %v411
    %1076 = vmatpush.msra.mxu0 %v409
    %1077 = vmatpush.msra.mxu0 %v407
    %1078 = vmatpush.msra.mxu0 %v405
    %1079 = vmatpush.msra.mxu0 %v403
    %1080 = vmatpush.msra.mxu0 %v401
    %1081 = vmatpush.msra.mxu0 %v399
    %1082 = vmatpush.msra.mxu0 %v397
    %1083 = vmatpush.msra.mxu0 %v395
    %1084 = vmatmul.f32.gmra.mxu0 %v628
    %v1085 = vpop.f32.mrf.mxu0
    %v1086 = vadd.f32 0.0, %v1085
    %1087 = vdwg.mxu0
    %1088 = vmatpush.msra.mxu0 %v456
    %1089 = vmatpush.msra.mxu0 %v454
    %1090 = vmatpush.msra.mxu0 %v452
    %1091 = vmatpush.msra.mxu0 %v450
    %1092 = vmatpush.msra.mxu0 %v448
    %1093 = vmatpush.msra.mxu0 %v446
    %1094 = vmatpush.msra.mxu0 %v444
    %1095 = vmatpush.msra.mxu0 %v442
    %1096 = vmatpush.msra.mxu0 %v440
    %1097 = vmatpush.msra.mxu0 %v438
    %1098 = vmatpush.msra.mxu0 %v436
    %1099 = vmatpush.msra.mxu0 %v434
    %1100 = vmatpush.msra.mxu0 %v432
    %1101 = vmatpush.msra.mxu0 %v430
    %1102 = vmatpush.msra.mxu0 %v428
    %1103 = vmatpush.msra.mxu0 %v426
    %1104 = vmatmul.f32.gmra.mxu0 %v629
    %v1105 = vpop.f32.mrf.mxu0
    %v1106 = vadd.f32 0.0, %v1105
    %1107 = vdwg.mxu0
    %1108 = vmatpush.msra.mxu0 %v457
    %1109 = vmatpush.msra.mxu0 %v455
    %1110 = vmatpush.msra.mxu0 %v453
    %1111 = vmatpush.msra.mxu0 %v451
    %1112 = vmatpush.msra.mxu0 %v449
    %1113 = vmatpush.msra.mxu0 %v447
    %1114 = vmatpush.msra.mxu0 %v445
    %1115 = vmatpush.msra.mxu0 %v443
    %1116 = vmatpush.msra.mxu0 %v441
    %1117 = vmatpush.msra.mxu0 %v439
    %1118 = vmatpush.msra.mxu0 %v437
    %1119 = vmatpush.msra.mxu0 %v435
    %1120 = vmatpush.msra.mxu0 %v433
    %1121 = vmatpush.msra.mxu0 %v431
    %1122 = vmatpush.msra.mxu0 %v429
    %1123 = vmatpush.msra.mxu0 %v427
    %1124 = vmatmul.f32.gmra.mxu0 %v629
    %v1125 = vpop.f32.mrf.mxu0
    %v1126 = vadd.f32 0.0, %v1125
    %1127 = vdwg.mxu0
    %1128 = vmatpush.msra.mxu0 %v488
    %1129 = vmatpush.msra.mxu0 %v486
    %1130 = vmatpush.msra.mxu0 %v484
    %1131 = vmatpush.msra.mxu0 %v482
    %1132 = vmatpush.msra.mxu0 %v480
    %1133 = vmatpush.msra.mxu0 %v478
    %1134 = vmatpush.msra.mxu0 %v476
    %1135 = vmatpush.msra.mxu0 %v474
    %1136 = vmatpush.msra.mxu0 %v472
    %1137 = vmatpush.msra.mxu0 %v470
    %1138 = vmatpush.msra.mxu0 %v468
    %1139 = vmatpush.msra.mxu0 %v466
    %1140 = vmatpush.msra.mxu0 %v464
    %1141 = vmatpush.msra.mxu0 %v462
    %1142 = vmatpush.msra.mxu0 %v460
    %1143 = vmatpush.msra.mxu0 %v458
    %1144 = vmatmul.f32.gmra.mxu0 %v630
    %v1145 = vpop.f32.mrf.mxu0
    %v1146 = vadd.f32 0.0, %v1145
    %1147 = vdwg.mxu0
    %1148 = vmatpush.msra.mxu0 %v489
    %1149 = vmatpush.msra.mxu0 %v487
    %1150 = vmatpush.msra.mxu0 %v485
    %1151 = vmatpush.msra.mxu0 %v483
    %1152 = vmatpush.msra.mxu0 %v481
    %1153 = vmatpush.msra.mxu0 %v479
    %1154 = vmatpush.msra.mxu0 %v477
    %1155 = vmatpush.msra.mxu0 %v475
    %1156 = vmatpush.msra.mxu0 %v473
    %1157 = vmatpush.msra.mxu0 %v471
    %1158 = vmatpush.msra.mxu0 %v469
    %1159 = vmatpush.msra.mxu0 %v467
    %1160 = vmatpush.msra.mxu0 %v465
    %1161 = vmatpush.msra.mxu0 %v463
    %1162 = vmatpush.msra.mxu0 %v461
    %1163 = vmatpush.msra.mxu0 %v459
    %1164 = vmatmul.f32.gmra.mxu0 %v630
    %v1165 = vpop.f32.mrf.mxu0
    %v1166 = vadd.f32 0.0, %v1165
    %1167 = vdwg.mxu0
    %1168 = vmatpush.msra.mxu0 %v520
    %1169 = vmatpush.msra.mxu0 %v518
    %1170 = vmatpush.msra.mxu0 %v516
    %1171 = vmatpush.msra.mxu0 %v514
    %1172 = vmatpush.msra.mxu0 %v512
    %1173 = vmatpush.msra.mxu0 %v510
    %1174 = vmatpush.msra.mxu0 %v508
    %1175 = vmatpush.msra.mxu0 %v506
    %1176 = vmatpush.msra.mxu0 %v504
    %1177 = vmatpush.msra.mxu0 %v502
    %1178 = vmatpush.msra.mxu0 %v500
    %1179 = vmatpush.msra.mxu0 %v498
    %1180 = vmatpush.msra.mxu0 %v496
    %1181 = vmatpush.msra.mxu0 %v494
    %1182 = vmatpush.msra.mxu0 %v492
    %1183 = vmatpush.msra.mxu0 %v490
    %1184 = vmatmul.f32.gmra.mxu0 %v631
    %v1185 = vpop.f32.mrf.mxu0
    %v1186 = vadd.f32 0.0, %v1185
    %1187 = vdwg.mxu0
    %1188 = vmatpush.msra.mxu0 %v521
    %1189 = vmatpush.msra.mxu0 %v519
    %1190 = vmatpush.msra.mxu0 %v517
    %1191 = vmatpush.msra.mxu0 %v515
    %1192 = vmatpush.msra.mxu0 %v513
    %1193 = vmatpush.msra.mxu0 %v511
    %1194 = vmatpush.msra.mxu0 %v509
    %1195 = vmatpush.msra.mxu0 %v507
    %1196 = vmatpush.msra.mxu0 %v505
    %1197 = vmatpush.msra.mxu0 %v503
    %1198 = vmatpush.msra.mxu0 %v501
    %1199 = vmatpush.msra.mxu0 %v499
    %1200 = vmatpush.msra.mxu0 %v497
    %1201 = vmatpush.msra.mxu0 %v495
    %1202 = vmatpush.msra.mxu0 %v493
    %1203 = vmatpush.msra.mxu0 %v491
    %1204 = vmatmul.f32.gmra.mxu0 %v631
    %v1205 = vpop.f32.mrf.mxu0
    %v1206 = vadd.f32 0.0, %v1205
    %1207 = vdwg.mxu0
    %1208 = vmatpush.msra.mxu0 %v552
    %1209 = vmatpush.msra.mxu0 %v550
    %1210 = vmatpush.msra.mxu0 %v548
    %1211 = vmatpush.msra.mxu0 %v546
    %1212 = vmatpush.msra.mxu0 %v544
    %1213 = vmatpush.msra.mxu0 %v542
    %1214 = vmatpush.msra.mxu0 %v540
    %1215 = vmatpush.msra.mxu0 %v538
    %1216 = vmatpush.msra.mxu0 %v536
    %1217 = vmatpush.msra.mxu0 %v534
    %1218 = vmatpush.msra.mxu0 %v532
    %1219 = vmatpush.msra.mxu0 %v530
    %1220 = vmatpush.msra.mxu0 %v528
    %1221 = vmatpush.msra.mxu0 %v526
    %1222 = vmatpush.msra.mxu0 %v524
    %1223 = vmatpush.msra.mxu0 %v522
    %1224 = vmatmul.f32.gmra.mxu0 %v632
    %v1225 = vpop.f32.mrf.mxu0
    %v1226 = vadd.f32 0.0, %v1225
    %1227 = vdwg.mxu0
    %1228 = vmatpush.msra.mxu0 %v553
    %1229 = vmatpush.msra.mxu0 %v551
    %1230 = vmatpush.msra.mxu0 %v549
    %1231 = vmatpush.msra.mxu0 %v547
    %1232 = vmatpush.msra.mxu0 %v545
    %1233 = vmatpush.msra.mxu0 %v543
    %1234 = vmatpush.msra.mxu0 %v541
    %1235 = vmatpush.msra.mxu0 %v539
    %1236 = vmatpush.msra.mxu0 %v537
    %1237 = vmatpush.msra.mxu0 %v535
    %1238 = vmatpush.msra.mxu0 %v533
    %1239 = vmatpush.msra.mxu0 %v531
    %1240 = vmatpush.msra.mxu0 %v529
    %1241 = vmatpush.msra.mxu0 %v527
    %1242 = vmatpush.msra.mxu0 %v525
    %1243 = vmatpush.msra.mxu0 %v523
    %1244 = vmatmul.f32.gmra.mxu0 %v632
    %v1245 = vpop.f32.mrf.mxu0
    %v1246 = vadd.f32 0.0, %v1245
    %1247 = vdwg.mxu0
    %1248 = vmatpush.msra.mxu0 %v584
    %1249 = vmatpush.msra.mxu0 %v582
    %1250 = vmatpush.msra.mxu0 %v580
    %1251 = vmatpush.msra.mxu0 %v578
    %1252 = vmatpush.msra.mxu0 %v576
    %1253 = vmatpush.msra.mxu0 %v574
    %1254 = vmatpush.msra.mxu0 %v572
    %1255 = vmatpush.msra.mxu0 %v570
    %1256 = vmatpush.msra.mxu0 %v568
    %1257 = vmatpush.msra.mxu0 %v566
    %1258 = vmatpush.msra.mxu0 %v564
    %1259 = vmatpush.msra.mxu0 %v562
    %1260 = vmatpush.msra.mxu0 %v560
    %1261 = vmatpush.msra.mxu0 %v558
    %1262 = vmatpush.msra.mxu0 %v556
    %1263 = vmatpush.msra.mxu0 %v554
    %1264 = vmatmul.f32.gmra.mxu0 %v633
    %v1265 = vpop.f32.mrf.mxu0
    %v1266 = vadd.f32 0.0, %v1265
    %1267 = vdwg.mxu0
    %1268 = vmatpush.msra.mxu0 %v585
    %1269 = vmatpush.msra.mxu0 %v583
    %1270 = vmatpush.msra.mxu0 %v581
    %1271 = vmatpush.msra.mxu0 %v579
    %1272 = vmatpush.msra.mxu0 %v577
    %1273 = vmatpush.msra.mxu0 %v575
    %1274 = vmatpush.msra.mxu0 %v573
    %1275 = vmatpush.msra.mxu0 %v571
    %1276 = vmatpush.msra.mxu0 %v569
    %1277 = vmatpush.msra.mxu0 %v567
    %1278 = vmatpush.msra.mxu0 %v565
    %1279 = vmatpush.msra.mxu0 %v563
    %1280 = vmatpush.msra.mxu0 %v561
    %1281 = vmatpush.msra.mxu0 %v559
    %1282 = vmatpush.msra.mxu0 %v557
    %1283 = vmatpush.msra.mxu0 %v555
    %1284 = vmatmul.f32.gmra.mxu0 %v633
    %v1285 = vpop.f32.mrf.mxu0
    %v1286 = vadd.f32 0.0, %v1285
    %1287 = vdwg.mxu0
    %v1288 = vadd.f32 %v666, 0.0
    %v1289 = vadd.f32 %v686, 0.0
    %v1290 = vadd.f32 %v706, 0.0
    %v1291 = vadd.f32 %v726, 0.0
    %v1292 = vadd.f32 %v746, 0.0
    %v1293 = vadd.f32 %v766, 0.0
    %v1294 = vadd.f32 %v786, 0.0
    %v1295 = vadd.f32 %v806, 0.0
    %v1296 = vadd.f32 %v826, 0.0
    %v1297 = vadd.f32 %v846, 0.0
    %v1298 = vadd.f32 %v866, 0.0
    %v1299 = vadd.f32 %v886, 0.0
    %v1300 = vadd.f32 %v906, 0.0
    %v1301 = vadd.f32 %v926, 0.0
    %v1302 = vadd.f32 %v946, 0.0
    %v1303 = vadd.f32 %v966, 0.0
    %v1304 = vadd.f32 %v986, 0.0
    %v1305 = vadd.f32 %v1006, 0.0
    %v1306 = vadd.f32 %v1026, 0.0
    %v1307 = vadd.f32 %v1046, 0.0
    %v1308 = vadd.f32 %v1066, 0.0
    %v1309 = vadd.f32 %v1086, 0.0
    %v1310 = vadd.f32 %v1106, 0.0
    %v1311 = vadd.f32 %v1126, 0.0
    %v1312 = vadd.f32 %v1146, 0.0
    %v1313 = vadd.f32 %v1166, 0.0
    %v1314 = vadd.f32 %v1186, 0.0
    %v1315 = vadd.f32 %v1206, 0.0
    %v1316 = vadd.f32 %v1226, 0.0
    %v1317 = vadd.f32 %v1246, 0.0
    %v1318 = vadd.f32 %v1266, 0.0
    %v1319 = vadd.f32 %v1286, 0.0
    %v1320 = vadd.f32 %v1288, %v1304
    %v1321 = vadd.f32 %v1289, %v1305
    %v1322 = vadd.f32 %v1290, %v1306
    %v1323 = vadd.f32 %v1291, %v1307
    %v1324 = vadd.f32 %v1292, %v1308
    %v1325 = vadd.f32 %v1293, %v1309
    %v1326 = vadd.f32 %v1294, %v1310
    %v1327 = vadd.f32 %v1295, %v1311
    %v1328 = vadd.f32 %v1296, %v1312
    %v1329 = vadd.f32 %v1297, %v1313
    %v1330 = vadd.f32 %v1298, %v1314
    %v1331 = vadd.f32 %v1299, %v1315
    %v1332 = vadd.f32 %v1300, %v1316
    %v1333 = vadd.f32 %v1301, %v1317
    %v1334 = vadd.f32 %v1302, %v1318
    %v1335 = vadd.f32 %v1303, %v1319
    %v1344 = vrot.slane %v1323, 7
    %vm1345 = vcmask 1041409
    %v1346 = vsel %vm1345, %v1344, %v1321
    %v1347 = vrot.slane %v1325, 6
    %vm1348 = vcmask 1042434
    %v1349 = vsel %vm1348, %v1347, %v1346
    %v1350 = vrot.slane %v1327, 5
    %vm1351 = vcmask 1043459
    %v1352 = vsel %vm1351, %v1350, %v1349
    %v1353 = vrot.slane %v1329, 4
    %vm1354 = vcmask 1044484
    %v1355 = vsel %vm1354, %v1353, %v1352
    %v1356 = vrot.slane %v1331, 3
    %vm1357 = vcmask 1045509
    %v1358 = vsel %vm1357, %v1356, %v1355
    %v1359 = vrot.slane %v1333, 2
    %vm1360 = vcmask 1046534
    %v1361 = vsel %vm1360, %v1359, %v1358
    %v1362 = vrot.slane %v1335, 1
    %vm1363 = vcmask 1047559
    %v1364 = vsel %vm1363, %v1362, %v1361
    %vm1366 = vcmask 64512
    %v1368 = vsel %vm1366, %v72, 0
    %v1371 = vsel %vm1366, %v73, 0
    %1373 = vmatpush.msra.mxu0 0.0
    %1374 = vmatpush.msra.mxu0 0.0
    %1375 = vmatpush.msra.mxu0 0.0
    %1376 = vmatpush.msra.mxu0 0.0
    %1377 = vmatpush.msra.mxu0 0.0
    %1378 = vmatpush.msra.mxu0 0.0
    %1379 = vmatpush.msra.mxu0 0.0
    %1380 = vmatpush.msra.mxu0 0.0
    %1381 = vmatpush.msra.mxu0 0.0
    %1382 = vmatpush.msra.mxu0 0.0
    %1383 = vmatpush.msra.mxu0 0.0
    %1384 = vmatpush.msra.mxu0 0.0
    %1385 = vmatpush.msra.mxu0 0.0
    %1386 = vmatpush.msra.mxu0 0.0
    %1387 = vmatpush.msra.mxu0 0.0
    %1388 = vmatpush.msra.mxu0 %v1364
    %1389 = vmatmul.f32.gmra.mxu0 %v1368
    %v1390 = vpop.f32.mrf.mxu0
    %v1391 = vadd.f32 0.0, %v1390
    %1392 = vmatmul.f32.gmra.mxu0 %v1371
    %v1393 = vpop.f32.mrf.mxu0
    %v1394 = vadd.f32 0.0, %v1393
    %1395 = vdwg.mxu0
    %v1404 = vrot.slane %v1322, 7
    %v1405 = vsel %vm1345, %v1404, %v1320
    %v1406 = vrot.slane %v1324, 6
    %v1407 = vsel %vm1348, %v1406, %v1405
    %v1408 = vrot.slane %v1326, 5
    %v1409 = vsel %vm1351, %v1408, %v1407
    %v1410 = vrot.slane %v1328, 4
    %v1411 = vsel %vm1354, %v1410, %v1409
    %v1412 = vrot.slane %v1330, 3
    %v1413 = vsel %vm1357, %v1412, %v1411
    %v1414 = vrot.slane %v1332, 2
    %v1415 = vsel %vm1360, %v1414, %v1413
    %v1416 = vrot.slane %v1334, 1
    %v1417 = vsel %vm1363, %v1416, %v1415
    %v1420 = vsel %vm1366, %v70, 0
    %v1423 = vsel %vm1366, %v71, 0
    %1425 = vmatpush.msra.mxu0 0.0
    %1426 = vmatpush.msra.mxu0 0.0
    %1427 = vmatpush.msra.mxu0 0.0
    %1428 = vmatpush.msra.mxu0 0.0
    %1429 = vmatpush.msra.mxu0 0.0
    %1430 = vmatpush.msra.mxu0 0.0
    %1431 = vmatpush.msra.mxu0 0.0
    %1432 = vmatpush.msra.mxu0 0.0
    %1433 = vmatpush.msra.mxu0 0.0
    %1434 = vmatpush.msra.mxu0 0.0
    %1435 = vmatpush.msra.mxu0 0.0
    %1436 = vmatpush.msra.mxu0 0.0
    %1437 = vmatpush.msra.mxu0 0.0
    %1438 = vmatpush.msra.mxu0 0.0
    %1439 = vmatpush.msra.mxu0 0.0
    %1440 = vmatpush.msra.mxu0 %v1417
    %1441 = vmatmul.f32.gmra.mxu0 %v1420
    %v1442 = vpop.f32.mrf.mxu0
    %v1443 = vadd.f32 %v1391, %v1442
    %1444 = vmatmul.f32.gmra.mxu0 %v1423
    %v1445 = vpop.f32.mrf.mxu0
    %v1446 = vadd.f32 %v1394, %v1445
    %1447 = vdwg.mxu0
    %1448 = vst [vmem:[#allocation8] sm:$0xff] %v1443
    %1449 = vst [vmem:[#allocation8 + $0x8] sm:$0xff] %v1446
    %s1450 = scalar_lea.vmem [#allocation2], 16
    %v1451 = vld [vmem:[%s1450] sm:$0xff]
    %v1452 = vld [vmem:[%s1450 + $0x8] sm:$0xff]
    %1453 = vmatpush.msra.mxu0 0.0
    %1454 = vmatpush.msra.mxu0 0.0
    %1455 = vmatpush.msra.mxu0 0.0
    %1456 = vmatpush.msra.mxu0 0.0
    %1457 = vmatpush.msra.mxu0 0.0
    %1458 = vmatpush.msra.mxu0 0.0
    %1459 = vmatpush.msra.mxu0 0.0
    %1460 = vmatpush.msra.mxu0 0.0
    %1461 = vmatpush.msra.mxu0 0.0
    %1462 = vmatpush.msra.mxu0 0.0
    %1463 = vmatpush.msra.mxu0 0.0
    %1464 = vmatpush.msra.mxu0 0.0
    %1465 = vmatpush.msra.mxu0 0.0
    %1466 = vmatpush.msra.mxu0 0.0
    %1467 = vmatpush.msra.mxu0 %v1452
    %1468 = vmatpush.msra.mxu0 %v1451
    %1469 = vmatmul.f32.gmra.mxu0 %v590
    %v1470 = vpop.f32.mrf.mxu0
    %v1471 = vadd.f32 0.0, %v1470
    %1472 = vmatmul.f32.gmra.mxu0 %v593
    %v1473 = vpop.f32.mrf.mxu0
    %v1474 = vadd.f32 0.0, %v1473
    %1475 = vdwg.mxu0
    %v1478 = vrot.slane %v1471, 1
    %v1479 = vrot.slane %v1471, 2
    %v1480 = vrot.slane %v1471, 3
    %v1481 = vrot.slane %v1471, 4
    %v1482 = vrot.slane %v1471, 5
    %v1483 = vrot.slane %v1471, 6
    %v1484 = vrot.slane %v1471, 7
    %v1485 = vrot.slane %v1474, 1
    %v1486 = vrot.slane %v1474, 2
    %v1487 = vrot.slane %v1474, 3
    %v1488 = vrot.slane %v1474, 4
    %v1489 = vrot.slane %v1474, 5
    %v1490 = vrot.slane %v1474, 6
    %v1491 = vrot.slane %v1474, 7
    %1506 = vmatpush.msra.mxu0 %v104
    %1507 = vmatpush.msra.mxu0 %v102
    %1508 = vmatpush.msra.mxu0 %v100
    %1509 = vmatpush.msra.mxu0 %v98
    %1510 = vmatpush.msra.mxu0 %v96
    %1511 = vmatpush.msra.mxu0 %v94
    %1512 = vmatpush.msra.mxu0 %v92
    %1513 = vmatpush.msra.mxu0 %v90
    %1514 = vmatpush.msra.mxu0 %v88
    %1515 = vmatpush.msra.mxu0 %v86
    %1516 = vmatpush.msra.mxu0 %v84
    %1517 = vmatpush.msra.mxu0 %v82
    %1518 = vmatpush.msra.mxu0 %v80
    %1519 = vmatpush.msra.mxu0 %v78
    %1520 = vmatpush.msra.mxu0 %v76
    %1521 = vmatpush.msra.mxu0 %v74
    %1522 = vmatmul.f32.gmra.mxu0 %v1471
    %v1523 = vpop.f32.mrf.mxu0
    %v1524 = vadd.f32 0.0, %v1523
    %1525 = vdwg.mxu0
    %1526 = vmatpush.msra.mxu0 %v105
    %1527 = vmatpush.msra.mxu0 %v103
    %1528 = vmatpush.msra.mxu0 %v101
    %1529 = vmatpush.msra.mxu0 %v99
    %1530 = vmatpush.msra.mxu0 %v97
    %1531 = vmatpush.msra.mxu0 %v95
    %1532 = vmatpush.msra.mxu0 %v93
    %1533 = vmatpush.msra.mxu0 %v91
    %1534 = vmatpush.msra.mxu0 %v89
    %1535 = vmatpush.msra.mxu0 %v87
    %1536 = vmatpush.msra.mxu0 %v85
    %1537 = vmatpush.msra.mxu0 %v83
    %1538 = vmatpush.msra.mxu0 %v81
    %1539 = vmatpush.msra.mxu0 %v79
    %1540 = vmatpush.msra.mxu0 %v77
    %1541 = vmatpush.msra.mxu0 %v75
    %1542 = vmatmul.f32.gmra.mxu0 %v1471
    %v1543 = vpop.f32.mrf.mxu0
    %v1544 = vadd.f32 0.0, %v1543
    %1545 = vdwg.mxu0
    %1546 = vmatpush.msra.mxu0 %v136
    %1547 = vmatpush.msra.mxu0 %v134
    %1548 = vmatpush.msra.mxu0 %v132
    %1549 = vmatpush.msra.mxu0 %v130
    %1550 = vmatpush.msra.mxu0 %v128
    %1551 = vmatpush.msra.mxu0 %v126
    %1552 = vmatpush.msra.mxu0 %v124
    %1553 = vmatpush.msra.mxu0 %v122
    %1554 = vmatpush.msra.mxu0 %v120
    %1555 = vmatpush.msra.mxu0 %v118
    %1556 = vmatpush.msra.mxu0 %v116
    %1557 = vmatpush.msra.mxu0 %v114
    %1558 = vmatpush.msra.mxu0 %v112
    %1559 = vmatpush.msra.mxu0 %v110
    %1560 = vmatpush.msra.mxu0 %v108
    %1561 = vmatpush.msra.mxu0 %v106
    %1562 = vmatmul.f32.gmra.mxu0 %v1478
    %v1563 = vpop.f32.mrf.mxu0
    %v1564 = vadd.f32 0.0, %v1563
    %1565 = vdwg.mxu0
    %1566 = vmatpush.msra.mxu0 %v137
    %1567 = vmatpush.msra.mxu0 %v135
    %1568 = vmatpush.msra.mxu0 %v133
    %1569 = vmatpush.msra.mxu0 %v131
    %1570 = vmatpush.msra.mxu0 %v129
    %1571 = vmatpush.msra.mxu0 %v127
    %1572 = vmatpush.msra.mxu0 %v125
    %1573 = vmatpush.msra.mxu0 %v123
    %1574 = vmatpush.msra.mxu0 %v121
    %1575 = vmatpush.msra.mxu0 %v119
    %1576 = vmatpush.msra.mxu0 %v117
    %1577 = vmatpush.msra.mxu0 %v115
    %1578 = vmatpush.msra.mxu0 %v113
    %1579 = vmatpush.msra.mxu0 %v111
    %1580 = vmatpush.msra.mxu0 %v109
    %1581 = vmatpush.msra.mxu0 %v107
    %1582 = vmatmul.f32.gmra.mxu0 %v1478
    %v1583 = vpop.f32.mrf.mxu0
    %v1584 = vadd.f32 0.0, %v1583
    %1585 = vdwg.mxu0
    %1586 = vmatpush.msra.mxu0 %v168
    %1587 = vmatpush.msra.mxu0 %v166
    %1588 = vmatpush.msra.mxu0 %v164
    %1589 = vmatpush.msra.mxu0 %v162
    %1590 = vmatpush.msra.mxu0 %v160
    %1591 = vmatpush.msra.mxu0 %v158
    %1592 = vmatpush.msra.mxu0 %v156
    %1593 = vmatpush.msra.mxu0 %v154
    %1594 = vmatpush.msra.mxu0 %v152
    %1595 = vmatpush.msra.mxu0 %v150
    %1596 = vmatpush.msra.mxu0 %v148
    %1597 = vmatpush.msra.mxu0 %v146
    %1598 = vmatpush.msra.mxu0 %v144
    %1599 = vmatpush.msra.mxu0 %v142
    %1600 = vmatpush.msra.mxu0 %v140
    %1601 = vmatpush.msra.mxu0 %v138
    %1602 = vmatmul.f32.gmra.mxu0 %v1479
    %v1603 = vpop.f32.mrf.mxu0
    %v1604 = vadd.f32 0.0, %v1603
    %1605 = vdwg.mxu0
    %1606 = vmatpush.msra.mxu0 %v169
    %1607 = vmatpush.msra.mxu0 %v167
    %1608 = vmatpush.msra.mxu0 %v165
    %1609 = vmatpush.msra.mxu0 %v163
    %1610 = vmatpush.msra.mxu0 %v161
    %1611 = vmatpush.msra.mxu0 %v159
    %1612 = vmatpush.msra.mxu0 %v157
    %1613 = vmatpush.msra.mxu0 %v155
    %1614 = vmatpush.msra.mxu0 %v153
    %1615 = vmatpush.msra.mxu0 %v151
    %1616 = vmatpush.msra.mxu0 %v149
    %1617 = vmatpush.msra.mxu0 %v147
    %1618 = vmatpush.msra.mxu0 %v145
    %1619 = vmatpush.msra.mxu0 %v143
    %1620 = vmatpush.msra.mxu0 %v141
    %1621 = vmatpush.msra.mxu0 %v139
    %1622 = vmatmul.f32.gmra.mxu0 %v1479
    %v1623 = vpop.f32.mrf.mxu0
    %v1624 = vadd.f32 0.0, %v1623
    %1625 = vdwg.mxu0
    %1626 = vmatpush.msra.mxu0 %v200
    %1627 = vmatpush.msra.mxu0 %v198
    %1628 = vmatpush.msra.mxu0 %v196
    %1629 = vmatpush.msra.mxu0 %v194
    %1630 = vmatpush.msra.mxu0 %v192
    %1631 = vmatpush.msra.mxu0 %v190
    %1632 = vmatpush.msra.mxu0 %v188
    %1633 = vmatpush.msra.mxu0 %v186
    %1634 = vmatpush.msra.mxu0 %v184
    %1635 = vmatpush.msra.mxu0 %v182
    %1636 = vmatpush.msra.mxu0 %v180
    %1637 = vmatpush.msra.mxu0 %v178
    %1638 = vmatpush.msra.mxu0 %v176
    %1639 = vmatpush.msra.mxu0 %v174
    %1640 = vmatpush.msra.mxu0 %v172
    %1641 = vmatpush.msra.mxu0 %v170
    %1642 = vmatmul.f32.gmra.mxu0 %v1480
    %v1643 = vpop.f32.mrf.mxu0
    %v1644 = vadd.f32 0.0, %v1643
    %1645 = vdwg.mxu0
    %1646 = vmatpush.msra.mxu0 %v201
    %1647 = vmatpush.msra.mxu0 %v199
    %1648 = vmatpush.msra.mxu0 %v197
    %1649 = vmatpush.msra.mxu0 %v195
    %1650 = vmatpush.msra.mxu0 %v193
    %1651 = vmatpush.msra.mxu0 %v191
    %1652 = vmatpush.msra.mxu0 %v189
    %1653 = vmatpush.msra.mxu0 %v187
    %1654 = vmatpush.msra.mxu0 %v185
    %1655 = vmatpush.msra.mxu0 %v183
    %1656 = vmatpush.msra.mxu0 %v181
    %1657 = vmatpush.msra.mxu0 %v179
    %1658 = vmatpush.msra.mxu0 %v177
    %1659 = vmatpush.msra.mxu0 %v175
    %1660 = vmatpush.msra.mxu0 %v173
    %1661 = vmatpush.msra.mxu0 %v171
    %1662 = vmatmul.f32.gmra.mxu0 %v1480
    %v1663 = vpop.f32.mrf.mxu0
    %v1664 = vadd.f32 0.0, %v1663
    %1665 = vdwg.mxu0
    %1666 = vmatpush.msra.mxu0 %v232
    %1667 = vmatpush.msra.mxu0 %v230
    %1668 = vmatpush.msra.mxu0 %v228
    %1669 = vmatpush.msra.mxu0 %v226
    %1670 = vmatpush.msra.mxu0 %v224
    %1671 = vmatpush.msra.mxu0 %v222
    %1672 = vmatpush.msra.mxu0 %v220
    %1673 = vmatpush.msra.mxu0 %v218
    %1674 = vmatpush.msra.mxu0 %v216
    %1675 = vmatpush.msra.mxu0 %v214
    %1676 = vmatpush.msra.mxu0 %v212
    %1677 = vmatpush.msra.mxu0 %v210
    %1678 = vmatpush.msra.mxu0 %v208
    %1679 = vmatpush.msra.mxu0 %v206
    %1680 = vmatpush.msra.mxu0 %v204
    %1681 = vmatpush.msra.mxu0 %v202
    %1682 = vmatmul.f32.gmra.mxu0 %v1481
    %v1683 = vpop.f32.mrf.mxu0
    %v1684 = vadd.f32 0.0, %v1683
    %1685 = vdwg.mxu0
    %1686 = vmatpush.msra.mxu0 %v233
    %1687 = vmatpush.msra.mxu0 %v231
    %1688 = vmatpush.msra.mxu0 %v229
    %1689 = vmatpush.msra.mxu0 %v227
    %1690 = vmatpush.msra.mxu0 %v225
    %1691 = vmatpush.msra.mxu0 %v223
    %1692 = vmatpush.msra.mxu0 %v221
    %1693 = vmatpush.msra.mxu0 %v219
    %1694 = vmatpush.msra.mxu0 %v217
    %1695 = vmatpush.msra.mxu0 %v215
    %1696 = vmatpush.msra.mxu0 %v213
    %1697 = vmatpush.msra.mxu0 %v211
    %1698 = vmatpush.msra.mxu0 %v209
    %1699 = vmatpush.msra.mxu0 %v207
    %1700 = vmatpush.msra.mxu0 %v205
    %1701 = vmatpush.msra.mxu0 %v203
    %1702 = vmatmul.f32.gmra.mxu0 %v1481
    %v1703 = vpop.f32.mrf.mxu0
    %v1704 = vadd.f32 0.0, %v1703
    %1705 = vdwg.mxu0
    %1706 = vmatpush.msra.mxu0 %v264
    %1707 = vmatpush.msra.mxu0 %v262
    %1708 = vmatpush.msra.mxu0 %v260
    %1709 = vmatpush.msra.mxu0 %v258
    %1710 = vmatpush.msra.mxu0 %v256
    %1711 = vmatpush.msra.mxu0 %v254
    %1712 = vmatpush.msra.mxu0 %v252
    %1713 = vmatpush.msra.mxu0 %v250
    %1714 = vmatpush.msra.mxu0 %v248
    %1715 = vmatpush.msra.mxu0 %v246
    %1716 = vmatpush.msra.mxu0 %v244
    %1717 = vmatpush.msra.mxu0 %v242
    %1718 = vmatpush.msra.mxu0 %v240
    %1719 = vmatpush.msra.mxu0 %v238
    %1720 = vmatpush.msra.mxu0 %v236
    %1721 = vmatpush.msra.mxu0 %v234
    %1722 = vmatmul.f32.gmra.mxu0 %v1482
    %v1723 = vpop.f32.mrf.mxu0
    %v1724 = vadd.f32 0.0, %v1723
    %1725 = vdwg.mxu0
    %1726 = vmatpush.msra.mxu0 %v265
    %1727 = vmatpush.msra.mxu0 %v263
    %1728 = vmatpush.msra.mxu0 %v261
    %1729 = vmatpush.msra.mxu0 %v259
    %1730 = vmatpush.msra.mxu0 %v257
    %1731 = vmatpush.msra.mxu0 %v255
    %1732 = vmatpush.msra.mxu0 %v253
    %1733 = vmatpush.msra.mxu0 %v251
    %1734 = vmatpush.msra.mxu0 %v249
    %1735 = vmatpush.msra.mxu0 %v247
    %1736 = vmatpush.msra.mxu0 %v245
    %1737 = vmatpush.msra.mxu0 %v243
    %1738 = vmatpush.msra.mxu0 %v241
    %1739 = vmatpush.msra.mxu0 %v239
    %1740 = vmatpush.msra.mxu0 %v237
    %1741 = vmatpush.msra.mxu0 %v235
    %1742 = vmatmul.f32.gmra.mxu0 %v1482
    %v1743 = vpop.f32.mrf.mxu0
    %v1744 = vadd.f32 0.0, %v1743
    %1745 = vdwg.mxu0
    %1746 = vmatpush.msra.mxu0 %v296
    %1747 = vmatpush.msra.mxu0 %v294
    %1748 = vmatpush.msra.mxu0 %v292
    %1749 = vmatpush.msra.mxu0 %v290
    %1750 = vmatpush.msra.mxu0 %v288
    %1751 = vmatpush.msra.mxu0 %v286
    %1752 = vmatpush.msra.mxu0 %v284
    %1753 = vmatpush.msra.mxu0 %v282
    %1754 = vmatpush.msra.mxu0 %v280
    %1755 = vmatpush.msra.mxu0 %v278
    %1756 = vmatpush.msra.mxu0 %v276
    %1757 = vmatpush.msra.mxu0 %v274
    %1758 = vmatpush.msra.mxu0 %v272
    %1759 = vmatpush.msra.mxu0 %v270
    %1760 = vmatpush.msra.mxu0 %v268
    %1761 = vmatpush.msra.mxu0 %v266
    %1762 = vmatmul.f32.gmra.mxu0 %v1483
    %v1763 = vpop.f32.mrf.mxu0
    %v1764 = vadd.f32 0.0, %v1763
    %1765 = vdwg.mxu0
    %1766 = vmatpush.msra.mxu0 %v297
    %1767 = vmatpush.msra.mxu0 %v295
    %1768 = vmatpush.msra.mxu0 %v293
    %1769 = vmatpush.msra.mxu0 %v291
    %1770 = vmatpush.msra.mxu0 %v289
    %1771 = vmatpush.msra.mxu0 %v287
    %1772 = vmatpush.msra.mxu0 %v285
    %1773 = vmatpush.msra.mxu0 %v283
    %1774 = vmatpush.msra.mxu0 %v281
    %1775 = vmatpush.msra.mxu0 %v279
    %1776 = vmatpush.msra.mxu0 %v277
    %1777 = vmatpush.msra.mxu0 %v275
    %1778 = vmatpush.msra.mxu0 %v273
    %1779 = vmatpush.msra.mxu0 %v271
    %1780 = vmatpush.msra.mxu0 %v269
    %1781 = vmatpush.msra.mxu0 %v267
    %1782 = vmatmul.f32.gmra.mxu0 %v1483
    %v1783 = vpop.f32.mrf.mxu0
    %v1784 = vadd.f32 0.0, %v1783
    %1785 = vdwg.mxu0
    %1786 = vmatpush.msra.mxu0 %v328
    %1787 = vmatpush.msra.mxu0 %v326
    %1788 = vmatpush.msra.mxu0 %v324
    %1789 = vmatpush.msra.mxu0 %v322
    %1790 = vmatpush.msra.mxu0 %v320
    %1791 = vmatpush.msra.mxu0 %v318
    %1792 = vmatpush.msra.mxu0 %v316
    %1793 = vmatpush.msra.mxu0 %v314
    %1794 = vmatpush.msra.mxu0 %v312
    %1795 = vmatpush.msra.mxu0 %v310
    %1796 = vmatpush.msra.mxu0 %v308
    %1797 = vmatpush.msra.mxu0 %v306
    %1798 = vmatpush.msra.mxu0 %v304
    %1799 = vmatpush.msra.mxu0 %v302
    %1800 = vmatpush.msra.mxu0 %v300
    %1801 = vmatpush.msra.mxu0 %v298
    %1802 = vmatmul.f32.gmra.mxu0 %v1484
    %v1803 = vpop.f32.mrf.mxu0
    %v1804 = vadd.f32 0.0, %v1803
    %1805 = vdwg.mxu0
    %1806 = vmatpush.msra.mxu0 %v329
    %1807 = vmatpush.msra.mxu0 %v327
    %1808 = vmatpush.msra.mxu0 %v325
    %1809 = vmatpush.msra.mxu0 %v323
    %1810 = vmatpush.msra.mxu0 %v321
    %1811 = vmatpush.msra.mxu0 %v319
    %1812 = vmatpush.msra.mxu0 %v317
    %1813 = vmatpush.msra.mxu0 %v315
    %1814 = vmatpush.msra.mxu0 %v313
    %1815 = vmatpush.msra.mxu0 %v311
    %1816 = vmatpush.msra.mxu0 %v309
    %1817 = vmatpush.msra.mxu0 %v307
    %1818 = vmatpush.msra.mxu0 %v305
    %1819 = vmatpush.msra.mxu0 %v303
    %1820 = vmatpush.msra.mxu0 %v301
    %1821 = vmatpush.msra.mxu0 %v299
    %1822 = vmatmul.f32.gmra.mxu0 %v1484
    %v1823 = vpop.f32.mrf.mxu0
    %v1824 = vadd.f32 0.0, %v1823
    %1825 = vdwg.mxu0
    %1826 = vmatpush.msra.mxu0 %v360
    %1827 = vmatpush.msra.mxu0 %v358
    %1828 = vmatpush.msra.mxu0 %v356
    %1829 = vmatpush.msra.mxu0 %v354
    %1830 = vmatpush.msra.mxu0 %v352
    %1831 = vmatpush.msra.mxu0 %v350
    %1832 = vmatpush.msra.mxu0 %v348
    %1833 = vmatpush.msra.mxu0 %v346
    %1834 = vmatpush.msra.mxu0 %v344
    %1835 = vmatpush.msra.mxu0 %v342
    %1836 = vmatpush.msra.mxu0 %v340
    %1837 = vmatpush.msra.mxu0 %v338
    %1838 = vmatpush.msra.mxu0 %v336
    %1839 = vmatpush.msra.mxu0 %v334
    %1840 = vmatpush.msra.mxu0 %v332
    %1841 = vmatpush.msra.mxu0 %v330
    %1842 = vmatmul.f32.gmra.mxu0 %v1474
    %v1843 = vpop.f32.mrf.mxu0
    %v1844 = vadd.f32 0.0, %v1843
    %1845 = vdwg.mxu0
    %1846 = vmatpush.msra.mxu0 %v361
    %1847 = vmatpush.msra.mxu0 %v359
    %1848 = vmatpush.msra.mxu0 %v357
    %1849 = vmatpush.msra.mxu0 %v355
    %1850 = vmatpush.msra.mxu0 %v353
    %1851 = vmatpush.msra.mxu0 %v351
    %1852 = vmatpush.msra.mxu0 %v349
    %1853 = vmatpush.msra.mxu0 %v347
    %1854 = vmatpush.msra.mxu0 %v345
    %1855 = vmatpush.msra.mxu0 %v343
    %1856 = vmatpush.msra.mxu0 %v341
    %1857 = vmatpush.msra.mxu0 %v339
    %1858 = vmatpush.msra.mxu0 %v337
    %1859 = vmatpush.msra.mxu0 %v335
    %1860 = vmatpush.msra.mxu0 %v333
    %1861 = vmatpush.msra.mxu0 %v331
    %1862 = vmatmul.f32.gmra.mxu0 %v1474
    %v1863 = vpop.f32.mrf.mxu0
    %v1864 = vadd.f32 0.0, %v1863
    %1865 = vdwg.mxu0
    %1866 = vmatpush.msra.mxu0 %v392
    %1867 = vmatpush.msra.mxu0 %v390
    %1868 = vmatpush.msra.mxu0 %v388
    %1869 = vmatpush.msra.mxu0 %v386
    %1870 = vmatpush.msra.mxu0 %v384
    %1871 = vmatpush.msra.mxu0 %v382
    %1872 = vmatpush.msra.mxu0 %v380
    %1873 = vmatpush.msra.mxu0 %v378
    %1874 = vmatpush.msra.mxu0 %v376
    %1875 = vmatpush.msra.mxu0 %v374
    %1876 = vmatpush.msra.mxu0 %v372
    %1877 = vmatpush.msra.mxu0 %v370
    %1878 = vmatpush.msra.mxu0 %v368
    %1879 = vmatpush.msra.mxu0 %v366
    %1880 = vmatpush.msra.mxu0 %v364
    %1881 = vmatpush.msra.mxu0 %v362
    %1882 = vmatmul.f32.gmra.mxu0 %v1485
    %v1883 = vpop.f32.mrf.mxu0
    %v1884 = vadd.f32 0.0, %v1883
    %1885 = vdwg.mxu0
    %1886 = vmatpush.msra.mxu0 %v393
    %1887 = vmatpush.msra.mxu0 %v391
    %1888 = vmatpush.msra.mxu0 %v389
    %1889 = vmatpush.msra.mxu0 %v387
    %1890 = vmatpush.msra.mxu0 %v385
    %1891 = vmatpush.msra.mxu0 %v383
    %1892 = vmatpush.msra.mxu0 %v381
    %1893 = vmatpush.msra.mxu0 %v379
    %1894 = vmatpush.msra.mxu0 %v377
    %1895 = vmatpush.msra.mxu0 %v375
    %1896 = vmatpush.msra.mxu0 %v373
    %1897 = vmatpush.msra.mxu0 %v371
    %1898 = vmatpush.msra.mxu0 %v369
    %1899 = vmatpush.msra.mxu0 %v367
    %1900 = vmatpush.msra.mxu0 %v365
    %1901 = vmatpush.msra.mxu0 %v363
    %1902 = vmatmul.f32.gmra.mxu0 %v1485
    %v1903 = vpop.f32.mrf.mxu0
    %v1904 = vadd.f32 0.0, %v1903
    %1905 = vdwg.mxu0
    %1906 = vmatpush.msra.mxu0 %v424
    %1907 = vmatpush.msra.mxu0 %v422
    %1908 = vmatpush.msra.mxu0 %v420
    %1909 = vmatpush.msra.mxu0 %v418
    %1910 = vmatpush.msra.mxu0 %v416
    %1911 = vmatpush.msra.mxu0 %v414
    %1912 = vmatpush.msra.mxu0 %v412
    %1913 = vmatpush.msra.mxu0 %v410
    %1914 = vmatpush.msra.mxu0 %v408
    %1915 = vmatpush.msra.mxu0 %v406
    %1916 = vmatpush.msra.mxu0 %v404
    %1917 = vmatpush.msra.mxu0 %v402
    %1918 = vmatpush.msra.mxu0 %v400
    %1919 = vmatpush.msra.mxu0 %v398
    %1920 = vmatpush.msra.mxu0 %v396
    %1921 = vmatpush.msra.mxu0 %v394
    %1922 = vmatmul.f32.gmra.mxu0 %v1486
    %v1923 = vpop.f32.mrf.mxu0
    %v1924 = vadd.f32 0.0, %v1923
    %1925 = vdwg.mxu0
    %1926 = vmatpush.msra.mxu0 %v425
    %1927 = vmatpush.msra.mxu0 %v423
    %1928 = vmatpush.msra.mxu0 %v421
    %1929 = vmatpush.msra.mxu0 %v419
    %1930 = vmatpush.msra.mxu0 %v417
    %1931 = vmatpush.msra.mxu0 %v415
    %1932 = vmatpush.msra.mxu0 %v413
    %1933 = vmatpush.msra.mxu0 %v411
    %1934 = vmatpush.msra.mxu0 %v409
    %1935 = vmatpush.msra.mxu0 %v407
    %1936 = vmatpush.msra.mxu0 %v405
    %1937 = vmatpush.msra.mxu0 %v403
    %1938 = vmatpush.msra.mxu0 %v401
    %1939 = vmatpush.msra.mxu0 %v399
    %1940 = vmatpush.msra.mxu0 %v397
    %1941 = vmatpush.msra.mxu0 %v395
    %1942 = vmatmul.f32.gmra.mxu0 %v1486
    %v1943 = vpop.f32.mrf.mxu0
    %v1944 = vadd.f32 0.0, %v1943
    %1945 = vdwg.mxu0
    %1946 = vmatpush.msra.mxu0 %v456
    %1947 = vmatpush.msra.mxu0 %v454
    %1948 = vmatpush.msra.mxu0 %v452
    %1949 = vmatpush.msra.mxu0 %v450
    %1950 = vmatpush.msra.mxu0 %v448
    %1951 = vmatpush.msra.mxu0 %v446
    %1952 = vmatpush.msra.mxu0 %v444
    %1953 = vmatpush.msra.mxu0 %v442
    %1954 = vmatpush.msra.mxu0 %v440
    %1955 = vmatpush.msra.mxu0 %v438
    %1956 = vmatpush.msra.mxu0 %v436
    %1957 = vmatpush.msra.mxu0 %v434
    %1958 = vmatpush.msra.mxu0 %v432
    %1959 = vmatpush.msra.mxu0 %v430
    %1960 = vmatpush.msra.mxu0 %v428
    %1961 = vmatpush.msra.mxu0 %v426
    %1962 = vmatmul.f32.gmra.mxu0 %v1487
    %v1963 = vpop.f32.mrf.mxu0
    %v1964 = vadd.f32 0.0, %v1963
    %1965 = vdwg.mxu0
    %1966 = vmatpush.msra.mxu0 %v457
    %1967 = vmatpush.msra.mxu0 %v455
    %1968 = vmatpush.msra.mxu0 %v453
    %1969 = vmatpush.msra.mxu0 %v451
    %1970 = vmatpush.msra.mxu0 %v449
    %1971 = vmatpush.msra.mxu0 %v447
    %1972 = vmatpush.msra.mxu0 %v445
    %1973 = vmatpush.msra.mxu0 %v443
    %1974 = vmatpush.msra.mxu0 %v441
    %1975 = vmatpush.msra.mxu0 %v439
    %1976 = vmatpush.msra.mxu0 %v437
    %1977 = vmatpush.msra.mxu0 %v435
    %1978 = vmatpush.msra.mxu0 %v433
    %1979 = vmatpush.msra.mxu0 %v431
    %1980 = vmatpush.msra.mxu0 %v429
    %1981 = vmatpush.msra.mxu0 %v427
    %1982 = vmatmul.f32.gmra.mxu0 %v1487
    %v1983 = vpop.f32.mrf.mxu0
    %v1984 = vadd.f32 0.0, %v1983
    %1985 = vdwg.mxu0
    %1986 = vmatpush.msra.mxu0 %v488
    %1987 = vmatpush.msra.mxu0 %v486
    %1988 = vmatpush.msra.mxu0 %v484
    %1989 = vmatpush.msra.mxu0 %v482
    %1990 = vmatpush.msra.mxu0 %v480
    %1991 = vmatpush.msra.mxu0 %v478
    %1992 = vmatpush.msra.mxu0 %v476
    %1993 = vmatpush.msra.mxu0 %v474
    %1994 = vmatpush.msra.mxu0 %v472
    %1995 = vmatpush.msra.mxu0 %v470
    %1996 = vmatpush.msra.mxu0 %v468
    %1997 = vmatpush.msra.mxu0 %v466
    %1998 = vmatpush.msra.mxu0 %v464
    %1999 = vmatpush.msra.mxu0 %v462
    %2000 = vmatpush.msra.mxu0 %v460
    %2001 = vmatpush.msra.mxu0 %v458
    %2002 = vmatmul.f32.gmra.mxu0 %v1488
    %v2003 = vpop.f32.mrf.mxu0
    %v2004 = vadd.f32 0.0, %v2003
    %2005 = vdwg.mxu0
    %2006 = vmatpush.msra.mxu0 %v489
    %2007 = vmatpush.msra.mxu0 %v487
    %2008 = vmatpush.msra.mxu0 %v485
    %2009 = vmatpush.msra.mxu0 %v483
    %2010 = vmatpush.msra.mxu0 %v481
    %2011 = vmatpush.msra.mxu0 %v479
    %2012 = vmatpush.msra.mxu0 %v477
    %2013 = vmatpush.msra.mxu0 %v475
    %2014 = vmatpush.msra.mxu0 %v473
    %2015 = vmatpush.msra.mxu0 %v471
    %2016 = vmatpush.msra.mxu0 %v469
    %2017 = vmatpush.msra.mxu0 %v467
    %2018 = vmatpush.msra.mxu0 %v465
    %2019 = vmatpush.msra.mxu0 %v463
    %2020 = vmatpush.msra.mxu0 %v461
    %2021 = vmatpush.msra.mxu0 %v459
    %2022 = vmatmul.f32.gmra.mxu0 %v1488
    %v2023 = vpop.f32.mrf.mxu0
    %v2024 = vadd.f32 0.0, %v2023
    %2025 = vdwg.mxu0
    %2026 = vmatpush.msra.mxu0 %v520
    %2027 = vmatpush.msra.mxu0 %v518
    %2028 = vmatpush.msra.mxu0 %v516
    %2029 = vmatpush.msra.mxu0 %v514
    %2030 = vmatpush.msra.mxu0 %v512
    %2031 = vmatpush.msra.mxu0 %v510
    %2032 = vmatpush.msra.mxu0 %v508
    %2033 = vmatpush.msra.mxu0 %v506
    %2034 = vmatpush.msra.mxu0 %v504
    %2035 = vmatpush.msra.mxu0 %v502
    %2036 = vmatpush.msra.mxu0 %v500
    %2037 = vmatpush.msra.mxu0 %v498
    %2038 = vmatpush.msra.mxu0 %v496
    %2039 = vmatpush.msra.mxu0 %v494
    %2040 = vmatpush.msra.mxu0 %v492
    %2041 = vmatpush.msra.mxu0 %v490
    %2042 = vmatmul.f32.gmra.mxu0 %v1489
    %v2043 = vpop.f32.mrf.mxu0
    %v2044 = vadd.f32 0.0, %v2043
    %2045 = vdwg.mxu0
    %2046 = vmatpush.msra.mxu0 %v521
    %2047 = vmatpush.msra.mxu0 %v519
    %2048 = vmatpush.msra.mxu0 %v517
    %2049 = vmatpush.msra.mxu0 %v515
    %2050 = vmatpush.msra.mxu0 %v513
    %2051 = vmatpush.msra.mxu0 %v511
    %2052 = vmatpush.msra.mxu0 %v509
    %2053 = vmatpush.msra.mxu0 %v507
    %2054 = vmatpush.msra.mxu0 %v505
    %2055 = vmatpush.msra.mxu0 %v503
    %2056 = vmatpush.msra.mxu0 %v501
    %2057 = vmatpush.msra.mxu0 %v499
    %2058 = vmatpush.msra.mxu0 %v497
    %2059 = vmatpush.msra.mxu0 %v495
    %2060 = vmatpush.msra.mxu0 %v493
    %2061 = vmatpush.msra.mxu0 %v491
    %2062 = vmatmul.f32.gmra.mxu0 %v1489
    %v2063 = vpop.f32.mrf.mxu0
    %v2064 = vadd.f32 0.0, %v2063
    %2065 = vdwg.mxu0
    %2066 = vmatpush.msra.mxu0 %v552
    %2067 = vmatpush.msra.mxu0 %v550
    %2068 = vmatpush.msra.mxu0 %v548
    %2069 = vmatpush.msra.mxu0 %v546
    %2070 = vmatpush.msra.mxu0 %v544
    %2071 = vmatpush.msra.mxu0 %v542
    %2072 = vmatpush.msra.mxu0 %v540
    %2073 = vmatpush.msra.mxu0 %v538
    %2074 = vmatpush.msra.mxu0 %v536
    %2075 = vmatpush.msra.mxu0 %v534
    %2076 = vmatpush.msra.mxu0 %v532
    %2077 = vmatpush.msra.mxu0 %v530
    %2078 = vmatpush.msra.mxu0 %v528
    %2079 = vmatpush.msra.mxu0 %v526
    %2080 = vmatpush.msra.mxu0 %v524
    %2081 = vmatpush.msra.mxu0 %v522
    %2082 = vmatmul.f32.gmra.mxu0 %v1490
    %v2083 = vpop.f32.mrf.mxu0
    %v2084 = vadd.f32 0.0, %v2083
    %2085 = vdwg.mxu0
    %2086 = vmatpush.msra.mxu0 %v553
    %2087 = vmatpush.msra.mxu0 %v551
    %2088 = vmatpush.msra.mxu0 %v549
    %2089 = vmatpush.msra.mxu0 %v547
    %2090 = vmatpush.msra.mxu0 %v545
    %2091 = vmatpush.msra.mxu0 %v543
    %2092 = vmatpush.msra.mxu0 %v541
    %2093 = vmatpush.msra.mxu0 %v539
    %2094 = vmatpush.msra.mxu0 %v537
    %2095 = vmatpush.msra.mxu0 %v535
    %2096 = vmatpush.msra.mxu0 %v533
    %2097 = vmatpush.msra.mxu0 %v531
    %2098 = vmatpush.msra.mxu0 %v529
    %2099 = vmatpush.msra.mxu0 %v527
    %2100 = vmatpush.msra.mxu0 %v525
    %2101 = vmatpush.msra.mxu0 %v523
    %2102 = vmatmul.f32.gmra.mxu0 %v1490
    %v2103 = vpop.f32.mrf.mxu0
    %v2104 = vadd.f32 0.0, %v2103
    %2105 = vdwg.mxu0
    %2106 = vmatpush.msra.mxu0 %v584
    %2107 = vmatpush.msra.mxu0 %v582
    %2108 = vmatpush.msra.mxu0 %v580
    %2109 = vmatpush.msra.mxu0 %v578
    %2110 = vmatpush.msra.mxu0 %v576
    %2111 = vmatpush.msra.mxu0 %v574
    %2112 = vmatpush.msra.mxu0 %v572
    %2113 = vmatpush.msra.mxu0 %v570
    %2114 = vmatpush.msra.mxu0 %v568
    %2115 = vmatpush.msra.mxu0 %v566
    %2116 = vmatpush.msra.mxu0 %v564
    %2117 = vmatpush.msra.mxu0 %v562
    %2118 = vmatpush.msra.mxu0 %v560
    %2119 = vmatpush.msra.mxu0 %v558
    %2120 = vmatpush.msra.mxu0 %v556
    %2121 = vmatpush.msra.mxu0 %v554
    %2122 = vmatmul.f32.gmra.mxu0 %v1491
    %v2123 = vpop.f32.mrf.mxu0
    %v2124 = vadd.f32 0.0, %v2123
    %2125 = vdwg.mxu0
    %2126 = vmatpush.msra.mxu0 %v585
    %2127 = vmatpush.msra.mxu0 %v583
    %2128 = vmatpush.msra.mxu0 %v581
    %2129 = vmatpush.msra.mxu0 %v579
    %2130 = vmatpush.msra.mxu0 %v577
    %2131 = vmatpush.msra.mxu0 %v575
    %2132 = vmatpush.msra.mxu0 %v573
    %2133 = vmatpush.msra.mxu0 %v571
    %2134 = vmatpush.msra.mxu0 %v569
    %2135 = vmatpush.msra.mxu0 %v567
    %2136 = vmatpush.msra.mxu0 %v565
    %2137 = vmatpush.msra.mxu0 %v563
    %2138 = vmatpush.msra.mxu0 %v561
    %2139 = vmatpush.msra.mxu0 %v559
    %2140 = vmatpush.msra.mxu0 %v557
    %2141 = vmatpush.msra.mxu0 %v555
    %2142 = vmatmul.f32.gmra.mxu0 %v1491
    %v2143 = vpop.f32.mrf.mxu0
    %v2144 = vadd.f32 0.0, %v2143
    %2145 = vdwg.mxu0
    %v2146 = vadd.f32 %v1524, 0.0
    %v2147 = vadd.f32 %v1544, 0.0
    %v2148 = vadd.f32 %v1564, 0.0
    %v2149 = vadd.f32 %v1584, 0.0
    %v2150 = vadd.f32 %v1604, 0.0
    %v2151 = vadd.f32 %v1624, 0.0
    %v2152 = vadd.f32 %v1644, 0.0
    %v2153 = vadd.f32 %v1664, 0.0
    %v2154 = vadd.f32 %v1684, 0.0
    %v2155 = vadd.f32 %v1704, 0.0
    %v2156 = vadd.f32 %v1724, 0.0
    %v2157 = vadd.f32 %v1744, 0.0
    %v2158 = vadd.f32 %v1764, 0.0
    %v2159 = vadd.f32 %v1784, 0.0
    %v2160 = vadd.f32 %v1804, 0.0
    %v2161 = vadd.f32 %v1824, 0.0
    %v2162 = vadd.f32 %v1844, 0.0
    %v2163 = vadd.f32 %v1864, 0.0
    %v2164 = vadd.f32 %v1884, 0.0
    %v2165 = vadd.f32 %v1904, 0.0
    %v2166 = vadd.f32 %v1924, 0.0
    %v2167 = vadd.f32 %v1944, 0.0
    %v2168 = vadd.f32 %v1964, 0.0
    %v2169 = vadd.f32 %v1984, 0.0
    %v2170 = vadd.f32 %v2004, 0.0
    %v2171 = vadd.f32 %v2024, 0.0
    %v2172 = vadd.f32 %v2044, 0.0
    %v2173 = vadd.f32 %v2064, 0.0
    %v2174 = vadd.f32 %v2084, 0.0
    %v2175 = vadd.f32 %v2104, 0.0
    %v2176 = vadd.f32 %v2124, 0.0
    %v2177 = vadd.f32 %v2144, 0.0
    %v2178 = vadd.f32 %v2146, %v2162
    %v2179 = vadd.f32 %v2147, %v2163
    %v2180 = vadd.f32 %v2148, %v2164
    %v2181 = vadd.f32 %v2149, %v2165
    %v2182 = vadd.f32 %v2150, %v2166
    %v2183 = vadd.f32 %v2151, %v2167
    %v2184 = vadd.f32 %v2152, %v2168
    %v2185 = vadd.f32 %v2153, %v2169
    %v2186 = vadd.f32 %v2154, %v2170
    %v2187 = vadd.f32 %v2155, %v2171
    %v2188 = vadd.f32 %v2156, %v2172
    %v2189 = vadd.f32 %v2157, %v2173
    %v2190 = vadd.f32 %v2158, %v2174
    %v2191 = vadd.f32 %v2159, %v2175
    %v2192 = vadd.f32 %v2160, %v2176
    %v2193 = vadd.f32 %v2161, %v2177
    %v2202 = vrot.slane %v2181, 7
    %v2203 = vsel %vm1345, %v2202, %v2179
    %v2204 = vrot.slane %v2183, 6
    %v2205 = vsel %vm1348, %v2204, %v2203
    %v2206 = vrot.slane %v2185, 5
    %v2207 = vsel %vm1351, %v2206, %v2205
    %v2208 = vrot.slane %v2187, 4
    %v2209 = vsel %vm1354, %v2208, %v2207
    %v2210 = vrot.slane %v2189, 3
    %v2211 = vsel %vm1357, %v2210, %v2209
    %v2212 = vrot.slane %v2191, 2
    %v2213 = vsel %vm1360, %v2212, %v2211
    %v2214 = vrot.slane %v2193, 1
    %v2215 = vsel %vm1363, %v2214, %v2213
    %2217 = vmatpush.msra.mxu0 0.0
    %2218 = vmatpush.msra.mxu0 0.0
    %2219 = vmatpush.msra.mxu0 0.0
    %2220 = vmatpush.msra.mxu0 0.0
    %2221 = vmatpush.msra.mxu0 0.0
    %2222 = vmatpush.msra.mxu0 0.0
    %2223 = vmatpush.msra.mxu0 0.0
    %2224 = vmatpush.msra.mxu0 0.0
    %2225 = vmatpush.msra.mxu0 0.0
    %2226 = vmatpush.msra.mxu0 0.0
    %2227 = vmatpush.msra.mxu0 0.0
    %2228 = vmatpush.msra.mxu0 0.0
    %2229 = vmatpush.msra.mxu0 0.0
    %2230 = vmatpush.msra.mxu0 0.0
    %2231 = vmatpush.msra.mxu0 0.0
    %2232 = vmatpush.msra.mxu0 %v2215
    %2233 = vmatmul.f32.gmra.mxu0 %v1368
    %v2234 = vpop.f32.mrf.mxu0
    %v2235 = vadd.f32 0.0, %v2234
    %2236 = vmatmul.f32.gmra.mxu0 %v1371
    %v2237 = vpop.f32.mrf.mxu0
    %v2238 = vadd.f32 0.0, %v2237
    %2239 = vdwg.mxu0
    %v2248 = vrot.slane %v2180, 7
    %v2249 = vsel %vm1345, %v2248, %v2178
    %v2250 = vrot.slane %v2182, 6
    %v2251 = vsel %vm1348, %v2250, %v2249
    %v2252 = vrot.slane %v2184, 5
    %v2253 = vsel %vm1351, %v2252, %v2251
    %v2254 = vrot.slane %v2186, 4
    %v2255 = vsel %vm1354, %v2254, %v2253
    %v2256 = vrot.slane %v2188, 3
    %v2257 = vsel %vm1357, %v2256, %v2255
    %v2258 = vrot.slane %v2190, 2
    %v2259 = vsel %vm1360, %v2258, %v2257
    %v2260 = vrot.slane %v2192, 1
    %v2261 = vsel %vm1363, %v2260, %v2259
    %2263 = vmatpush.msra.mxu0 0.0
    %2264 = vmatpush.msra.mxu0 0.0
    %2265 = vmatpush.msra.mxu0 0.0
    %2266 = vmatpush.msra.mxu0 0.0
    %2267 = vmatpush.msra.mxu0 0.0
    %2268 = vmatpush.msra.mxu0 0.0
    %2269 = vmatpush.msra.mxu0 0.0
    %2270 = vmatpush.msra.mxu0 0.0
    %2271 = vmatpush.msra.mxu0 0.0
    %2272 = vmatpush.msra.mxu0 0.0
    %2273 = vmatpush.msra.mxu0 0.0
    %2274 = vmatpush.msra.mxu0 0.0
    %2275 = vmatpush.msra.mxu0 0.0
    %2276 = vmatpush.msra.mxu0 0.0
    %2277 = vmatpush.msra.mxu0 0.0
    %2278 = vmatpush.msra.mxu0 %v2261
    %2279 = vmatmul.f32.gmra.mxu0 %v1420
    %v2280 = vpop.f32.mrf.mxu0
    %v2281 = vadd.f32 %v2235, %v2280
    %2282 = vmatmul.f32.gmra.mxu0 %v1423
    %v2283 = vpop.f32.mrf.mxu0
    %v2284 = vadd.f32 %v2238, %v2283
    %2285 = vdwg.mxu0
    %s2286 = scalar_lea.vmem [#allocation8], 16
    %2287 = vst [vmem:[%s2286] sm:$0xff] %v2281
    %2288 = vst [vmem:[%s2286 + $0x8] sm:$0xff] %v2284
    // Predicated region
    $region34: #{tpu_custom_call.1} parent=1 // pred_check
      _
    $region35: #{tpu_custom_call.1} parent=1 // pred_check_branch
      %2290 = sbr.rel (0) target = $region37
    $region36: #{tpu_custom_call.1} parent=1 // pred_region
      %2292 = vsyncadd [#allocation4], 0
      %s2293 = sshll.u32 [#allocation8], 4
      %s2294 = int_to_ptr.vmem [resolvable:$true] %s2293
      %s2295 = sshll.u32 %s5, 4
      %s2296 = int_to_ptr.hbm [resolvable:$true] %s2295
      %2301 = dma.vmem_to_hbm [thread:$0]  %s2294, 512, %s2296, [#allocation4], 128, 128, 8
    $region37: #{tpu_custom_call.1} parent=1 // pred_fallthru
      _
    // Predicated region
    $region38: #{tpu_custom_call.1} parent=1 // pred_check
      _
    $region39: #{tpu_custom_call.1} parent=1 // pred_check_branch
      %2303 = sbr.rel (0) target = $region41
    $region40: #{tpu_custom_call.1} parent=1 // pred_region
      %2305 = dma.done [#allocation4], 512
    $region41: #{tpu_custom_call.1} parent=1 // pred_fallthru
      _
    %2306 = vsyncpa [#allocation3], 1
    %2307 = vsyncpa [#allocation6], 1
    %2308 = vsyncpa [#allocation4], 1

</llo_original>
